<compile_context>
chip_gen: v7x
topology: tpu7x:2x2x1
jax: 0.10.0
libtpu: 0.0.40
codegen_flags: <defaults>
</compile_context>

<pallas_src>
import jax
import jax.numpy as jnp
from jax import lax
from jax.experimental import pallas as pl
from jax.experimental.pallas import tpu as pltpu


def bottleneck_kernel(x_ref, w1_ref, w2_ref, w3_ref,
                      s1_ref, b1_ref, s2_ref, b2_ref, s3_ref, b3_ref,
                      o_ref):
    # x_ref:  (NB, H, W, Cin)  bf16       w1_ref: (Cin, Cm)      bf16
    # w2_ref: (9*Cm, Cm)       bf16 (im2col-reshaped HWIO 3x3 weights)
    # w3_ref: (Cm, Cout)       bf16       s*/b*:  (1, C)         f32
    NB, H, W, Cin = x_ref.shape
    Cm = w1_ref.shape[1]
    Cout = w3_ref.shape[1]
    M = NB * H * W
    f32 = jnp.float32
    bf16 = jnp.bfloat16

    # ---- conv1 (1x1) + bn1 + relu: bf16 matmul, f32 epilogue ---------------
    x = x_ref[...]                                           # (NB,H,W,Cin)
    y1 = jnp.dot(x.reshape(M, Cin), w1_ref[...],
                 preferred_element_type=f32)                 # (M, Cm) f32
    y1 = jnp.maximum(y1 * s1_ref[...] + b1_ref[...], 0.0)

    # ---- conv2 (3x3, stride 1, pad 1) as ONE im2col matmul -----------------
    # Zero halo built as a value (no misaligned scratch stores), then the 9
    # shifted taps are concatenated along K so the accumulation stays in the MXU.
    y1 = y1.reshape(NB, H, W, Cm)
    zrow = jnp.zeros((NB, 1, W, Cm), f32)
    zcol = jnp.zeros((NB, H + 2, 1, Cm), f32)
    y1p = jnp.concatenate([zrow, y1, zrow], axis=1)          # (NB, H+2, W,   Cm)
    y1p = jnp.concatenate([zcol, y1p, zcol], axis=2)         # (NB, H+2, W+2, Cm)
    taps = [y1p[:, kh:kh + H, kw:kw + W, :].reshape(M, Cm)
            for kh in range(3) for kw in range(3)]
    patches = jnp.concatenate(taps, axis=-1)                 # (M, 9*Cm) f32
    y2 = jnp.dot(patches.astype(bf16), w2_ref[...],
                 preferred_element_type=f32)                 # (M, Cm) f32
    y2 = jnp.maximum(y2 * s2_ref[...] + b2_ref[...], 0.0)

    # ---- conv3 (1x1) + bn3 + residual add + relu ---------------------------
    y3 = jnp.dot(y2.astype(bf16), w3_ref[...], preferred_element_type=f32)
    y3 = y3 * s3_ref[...] + b3_ref[...]
    identity = x_ref[...].reshape(M, Cout).astype(f32)       # re-read at use
    out = jnp.maximum(y3 + identity, 0.0)                    # (M, Cout) f32
    o_ref[...] = out.reshape(NB, H, W, Cout).astype(o_ref.dtype)


def bottleneck_block(x_nhwc, w1, w2_mat, w3, s1, b1, s2, b2, s3, b3):
    """x_nhwc: (N,H,W,Cin) bf16; w1:(Cin,Cm), w2_mat:(9*Cm,Cm), w3:(Cm,Cout) bf16;
    s*/b*: (1,C) f32 folded BN. Returns f32 (N,H,W,Cout)."""
    N, H, W, Cin = x_nhwc.shape
    Cm = w1.shape[1]
    Cout = w3.shape[1]
    assert Cout == Cin, "identity_downsample=None requires Cin == 4*Cm"

    # Fold batch into the matmul M dimension: largest batch block nb (dividing N)
    # such that M = nb*H*W >= 128 (MXU-native M tile) where possible.
    target = max(1, -(-128 // (H * W)))
    nb = min(N, target)
    while N % nb:
        nb -= 1
    grid = (N // nb,)

    def full_spec(a):
        nd = a.ndim
        return pl.BlockSpec(a.shape, lambda n, nd=nd: (0,) * nd)

    grid_spec = pltpu.PrefetchScalarGridSpec(
        num_scalar_prefetch=0,
        grid=grid,
        in_specs=[
            pl.BlockSpec((nb, H, W, Cin), lambda n: (n, 0, 0, 0)),
            full_spec(w1), full_spec(w2_mat), full_spec(w3),
            full_spec(s1), full_spec(b1),
            full_spec(s2), full_spec(b2),
            full_spec(s3), full_spec(b3),
        ],
        out_specs=pl.BlockSpec((nb, H, W, Cout), lambda n: (n, 0, 0, 0)),
    )
    return pl.pallas_call(
        bottleneck_kernel,
        out_shape=jax.ShapeDtypeStruct((N, H, W, Cout), jnp.float32),
        grid_spec=grid_spec,
        compiler_params=pltpu.CompilerParams(
            dimension_semantics=("parallel",),
            # explicit scoped-VMEM budget (fits all of v5e/v6e/v7x; actual use is tiny)
            vmem_limit_bytes=32 * 1024 * 1024),
    )(x_nhwc, w1, w2_mat, w3, s1, b1, s2, b2, s3, b3)


def reference_forward(x_bf16, w1_b, w2_hwio_b, w3_b, s1, b1, s2, b2, s3, b3):
    """Plain-JAX reference using the same bf16 operands / f32 accumulation."""
    f32 = jnp.float32
    bf16 = jnp.bfloat16
    y = jnp.einsum('nhwc,cd->nhwd', x_bf16, w1_b, preferred_element_type=f32)
    y = jnp.maximum(y * s1.reshape(1, 1, 1, -1) + b1.reshape(1, 1, 1, -1), 0.0)
    y = lax.conv_general_dilated(
        y.astype(bf16), w2_hwio_b, window_strides=(1, 1), padding='SAME',
        dimension_numbers=('NHWC', 'HWIO', 'NHWC'),
        preferred_element_type=f32)
    y = jnp.maximum(y * s2.reshape(1, 1, 1, -1) + b2.reshape(1, 1, 1, -1), 0.0)
    y = jnp.einsum('nhwc,cd->nhwd', y.astype(bf16), w3_b,
                   preferred_element_type=f32)
    y = y * s3.reshape(1, 1, 1, -1) + b3.reshape(1, 1, 1, -1)
    return jnp.maximum(y + x_bf16.astype(f32), 0.0)


def fold_bn(kg, kb, km, kv, c, eps=1e-5):
    gamma = 1.0 + 0.1 * jax.random.normal(kg, (c,), jnp.float32)
    beta = 0.1 * jax.random.normal(kb, (c,), jnp.float32)
    mean = 0.1 * jax.random.normal(km, (c,), jnp.float32)
    var = jax.random.uniform(kv, (c,), jnp.float32, minval=0.5, maxval=1.5)
    scale = gamma / jnp.sqrt(var + eps)
    shift = beta - mean * scale
    return scale.reshape(1, c), shift.reshape(1, c)


if __name__ == "__main__":
    key = jax.random.PRNGKey(0)
    ks = jax.random.split(key, 16)

    # small, chess-board-ish shapes: batch=2, in_channels=32, intermediate=8,
    # spatial 8x8, stride=1, identity_downsample=None  (Cout = 4*8 = 32 = Cin)
    N, Cin, H, W = 2, 32, 8, 8
    Cm = 8
    Cout = 4 * Cm

    x_nchw = jax.random.normal(ks[0], (N, Cin, H, W), jnp.float32)

    # PyTorch-style OIHW conv weights, deterministically initialized
    w1_oihw = 0.1 * jax.random.normal(ks[1], (Cm, Cin, 1, 1), jnp.float32)
    w2_oihw = 0.1 * jax.random.normal(ks[2], (Cm, Cm, 3, 3), jnp.float32)
    w3_oihw = 0.1 * jax.random.normal(ks[3], (Cout, Cm, 1, 1), jnp.float32)

    s1, b1 = fold_bn(ks[4], ks[5], ks[6], ks[7], Cm)
    s2, b2 = fold_bn(ks[8], ks[9], ks[10], ks[11], Cm)
    s3, b3 = fold_bn(ks[12], ks[13], ks[14], ks[15], Cout)

    # layout conversion: NCHW -> NHWC, OIHW -> matmul / HWIO; bf16 matmul operands
    x_bf16 = jnp.transpose(x_nchw, (0, 2, 3, 1)).astype(jnp.bfloat16)
    w1_b = jnp.transpose(w1_oihw[:, :, 0, 0], (1, 0)).astype(jnp.bfloat16)   # (Cin, Cm)
    w2_hwio_b = jnp.transpose(w2_oihw, (2, 3, 1, 0)).astype(jnp.bfloat16)    # (3,3,Cm,Cm)
    w2_mat = w2_hwio_b.reshape(9 * Cm, Cm)                                    # (9*Cm, Cm)
    w3_b = jnp.transpose(w3_oihw[:, :, 0, 0], (1, 0)).astype(jnp.bfloat16)   # (Cm, Cout)

    out = bottleneck_block(x_bf16, w1_b, w2_mat, w3_b, s1, b1, s2, b2, s3, b3)
    out = jax.block_until_ready(out)

    ref = reference_forward(x_bf16, w1_b, w2_hwio_b, w3_b, s1, b1, s2, b2, s3, b3)
    assert out.shape == (N, H, W, Cout)
    assert jnp.allclose(out, ref, atol=1e-2, rtol=1e-2), (
        float(jnp.max(jnp.abs(out - ref))))

    print("KERNEL_OK")
</pallas_src>

<mosaic_0001>
module attributes {stable_mosaic.version = 11 : i64} {
  func.func @bottleneck_kernel(%arg0: i32, %arg1: memref<2x8x8x32xbf16, #tpu.memory_space<vmem>>, %arg2: memref<32x8xbf16, #tpu.memory_space<vmem>>, %arg3: memref<72x8xbf16, #tpu.memory_space<vmem>>, %arg4: memref<8x32xbf16, #tpu.memory_space<vmem>>, %arg5: memref<1x8xf32, #tpu.memory_space<vmem>>, %arg6: memref<1x8xf32, #tpu.memory_space<vmem>>, %arg7: memref<1x8xf32, #tpu.memory_space<vmem>>, %arg8: memref<1x8xf32, #tpu.memory_space<vmem>>, %arg9: memref<1x32xf32, #tpu.memory_space<vmem>>, %arg10: memref<1x32xf32, #tpu.memory_space<vmem>>, %arg11: memref<2x8x8x32xf32, #tpu.memory_space<vmem>>) attributes {dimension_semantics = [#tpu.dimension_semantics<parallel>], iteration_bounds = array<i64: 1>, scalar_prefetch = 0 : i64, scratch_operands = 0 : i64, tpu.core_type = #tpu.core_type<tc>, window_params = [{transform_indices = @transform_0, window_bounds = array<i64: 2, 8, 8, 32>}, {pipeline_mode = #tpu.pipeline_mode<synchronous>, transform_indices = @transform_1, window_bounds = array<i64: 32, 8>}, {pipeline_mode = #tpu.pipeline_mode<synchronous>, transform_indices = @transform_2, window_bounds = array<i64: 72, 8>}, {pipeline_mode = #tpu.pipeline_mode<synchronous>, transform_indices = @transform_3, window_bounds = array<i64: 8, 32>}, {pipeline_mode = #tpu.pipeline_mode<synchronous>, transform_indices = @transform_4, window_bounds = array<i64: 1, 8>}, {pipeline_mode = #tpu.pipeline_mode<synchronous>, transform_indices = @transform_5, window_bounds = array<i64: 1, 8>}, {pipeline_mode = #tpu.pipeline_mode<synchronous>, transform_indices = @transform_6, window_bounds = array<i64: 1, 8>}, {pipeline_mode = #tpu.pipeline_mode<synchronous>, transform_indices = @transform_7, window_bounds = array<i64: 1, 8>}, {pipeline_mode = #tpu.pipeline_mode<synchronous>, transform_indices = @transform_8, window_bounds = array<i64: 1, 32>}, {pipeline_mode = #tpu.pipeline_mode<synchronous>, transform_indices = @transform_9, window_bounds = array<i64: 1, 32>}, {transform_indices = @transform_10, window_bounds = array<i64: 2, 8, 8, 32>}]} {
    %c0 = arith.constant 0 : index
    %c0_0 = arith.constant 0 : index
    %c0_1 = arith.constant 0 : index
    %c0_2 = arith.constant 0 : index
    %0 = vector.load %arg1[%c0, %c0_0, %c0_1, %c0_2] : memref<2x8x8x32xbf16, #tpu.memory_space<vmem>>, vector<2x8x8x32xbf16>
    %1 = vector.shape_cast %0 : vector<2x8x8x32xbf16> to vector<128x32xbf16>
    %c0_3 = arith.constant 0 : index
    %c0_4 = arith.constant 0 : index
    %2 = vector.load %arg2[%c0_3, %c0_4] : memref<32x8xbf16, #tpu.memory_space<vmem>>, vector<32x8xbf16>
    %cst = arith.constant dense<0.000000e+00> : vector<128x8xf32>
    %3 = tpu.matmul %1, %2, %cst {dimension_numbers = #tpu.dot_dimension_numbers<[1], [0], [0], [1], [0, 0, 1, 1], [], []>} : vector<128x32xbf16>, vector<32x8xbf16>, vector<128x8xf32> -> vector<128x8xf32>
    %c0_5 = arith.constant 0 : index
    %c0_6 = arith.constant 0 : index
    %4 = vector.load %arg5[%c0_5, %c0_6] : memref<1x8xf32, #tpu.memory_space<vmem>>, vector<1x8xf32>
    %5 = vector.broadcast %4 : vector<1x8xf32> to vector<128x8xf32>
    %6 = arith.mulf %3, %5 : vector<128x8xf32>
    %c0_7 = arith.constant 0 : index
    %c0_8 = arith.constant 0 : index
    %7 = vector.load %arg6[%c0_7, %c0_8] : memref<1x8xf32, #tpu.memory_space<vmem>>, vector<1x8xf32>
    %8 = vector.broadcast %7 : vector<1x8xf32> to vector<128x8xf32>
    %9 = arith.addf %6, %8 : vector<128x8xf32>
    %cst_9 = arith.constant 0.000000e+00 : f32
    %10 = vector.broadcast %cst_9 : f32 to vector<128x8xf32>
    %11 = arith.maximumf %9, %10 : vector<128x8xf32>
    %12 = vector.shape_cast %11 : vector<128x8xf32> to vector<2x8x8x8xf32>
    %cst_10 = arith.constant 0.000000e+00 : f32
    %13 = vector.broadcast %cst_10 : f32 to vector<2x1x8x8xf32>
    %cst_11 = arith.constant 0.000000e+00 : f32
    %14 = vector.broadcast %cst_11 : f32 to vector<2x10x1x8xf32>
    %15 = tpu.concatenate %13, %12, %13 in 1 : vector<2x1x8x8xf32>, vector<2x8x8x8xf32>, vector<2x1x8x8xf32> -> vector<2x10x8x8xf32>
    %16 = tpu.concatenate %14, %15, %14 in 2 : vector<2x10x1x8xf32>, vector<2x10x8x8xf32>, vector<2x10x1x8xf32> -> vector<2x10x10x8xf32>
    %17 = vector.extract_strided_slice %16 {offsets = [0, 0, 0, 0], sizes = [2, 8, 8, 8], strides = [1, 1, 1, 1]} : vector<2x10x10x8xf32> to vector<2x8x8x8xf32>
    %18 = vector.shape_cast %17 : vector<2x8x8x8xf32> to vector<128x8xf32>
    %19 = vector.extract_strided_slice %16 {offsets = [0, 0, 1, 0], sizes = [2, 8, 8, 8], strides = [1, 1, 1, 1]} : vector<2x10x10x8xf32> to vector<2x8x8x8xf32>
    %20 = vector.shape_cast %19 : vector<2x8x8x8xf32> to vector<128x8xf32>
    %21 = vector.extract_strided_slice %16 {offsets = [0, 0, 2, 0], sizes = [2, 8, 8, 8], strides = [1, 1, 1, 1]} : vector<2x10x10x8xf32> to vector<2x8x8x8xf32>
    %22 = vector.shape_cast %21 : vector<2x8x8x8xf32> to vector<128x8xf32>
    %23 = vector.extract_strided_slice %16 {offsets = [0, 1, 0, 0], sizes = [2, 8, 8, 8], strides = [1, 1, 1, 1]} : vector<2x10x10x8xf32> to vector<2x8x8x8xf32>
    %24 = vector.shape_cast %23 : vector<2x8x8x8xf32> to vector<128x8xf32>
    %25 = vector.extract_strided_slice %16 {offsets = [0, 1, 1, 0], sizes = [2, 8, 8, 8], strides = [1, 1, 1, 1]} : vector<2x10x10x8xf32> to vector<2x8x8x8xf32>
    %26 = vector.shape_cast %25 : vector<2x8x8x8xf32> to vector<128x8xf32>
    %27 = vector.extract_strided_slice %16 {offsets = [0, 1, 2, 0], sizes = [2, 8, 8, 8], strides = [1, 1, 1, 1]} : vector<2x10x10x8xf32> to vector<2x8x8x8xf32>
    %28 = vector.shape_cast %27 : vector<2x8x8x8xf32> to vector<128x8xf32>
    %29 = vector.extract_strided_slice %16 {offsets = [0, 2, 0, 0], sizes = [2, 8, 8, 8], strides = [1, 1, 1, 1]} : vector<2x10x10x8xf32> to vector<2x8x8x8xf32>
    %30 = vector.shape_cast %29 : vector<2x8x8x8xf32> to vector<128x8xf32>
    %31 = vector.extract_strided_slice %16 {offsets = [0, 2, 1, 0], sizes = [2, 8, 8, 8], strides = [1, 1, 1, 1]} : vector<2x10x10x8xf32> to vector<2x8x8x8xf32>
    %32 = vector.shape_cast %31 : vector<2x8x8x8xf32> to vector<128x8xf32>
    %33 = vector.extract_strided_slice %16 {offsets = [0, 2, 2, 0], sizes = [2, 8, 8, 8], strides = [1, 1, 1, 1]} : vector<2x10x10x8xf32> to vector<2x8x8x8xf32>
    %34 = vector.shape_cast %33 : vector<2x8x8x8xf32> to vector<128x8xf32>
    %35 = tpu.concatenate %18, %20, %22, %24, %26, %28, %30, %32, %34 in 1 : vector<128x8xf32>, vector<128x8xf32>, vector<128x8xf32>, vector<128x8xf32>, vector<128x8xf32>, vector<128x8xf32>, vector<128x8xf32>, vector<128x8xf32>, vector<128x8xf32> -> vector<128x72xf32>
    %36 = arith.truncf %35 : vector<128x72xf32> to vector<128x72xbf16>
    %c0_12 = arith.constant 0 : index
    %c0_13 = arith.constant 0 : index
    %37 = vector.load %arg3[%c0_12, %c0_13] : memref<72x8xbf16, #tpu.memory_space<vmem>>, vector<72x8xbf16>
    %cst_14 = arith.constant dense<0.000000e+00> : vector<128x8xf32>
    %38 = tpu.matmul %36, %37, %cst_14 {dimension_numbers = #tpu.dot_dimension_numbers<[1], [0], [0], [1], [0, 0, 1, 1], [], []>} : vector<128x72xbf16>, vector<72x8xbf16>, vector<128x8xf32> -> vector<128x8xf32>
    %c0_15 = arith.constant 0 : index
    %c0_16 = arith.constant 0 : index
    %39 = vector.load %arg7[%c0_15, %c0_16] : memref<1x8xf32, #tpu.memory_space<vmem>>, vector<1x8xf32>
    %40 = vector.broadcast %39 : vector<1x8xf32> to vector<128x8xf32>
    %41 = arith.mulf %38, %40 : vector<128x8xf32>
    %c0_17 = arith.constant 0 : index
    %c0_18 = arith.constant 0 : index
    %42 = vector.load %arg8[%c0_17, %c0_18] : memref<1x8xf32, #tpu.memory_space<vmem>>, vector<1x8xf32>
    %43 = vector.broadcast %42 : vector<1x8xf32> to vector<128x8xf32>
    %44 = arith.addf %41, %43 : vector<128x8xf32>
    %cst_19 = arith.constant 0.000000e+00 : f32
    %45 = vector.broadcast %cst_19 : f32 to vector<128x8xf32>
    %46 = arith.maximumf %44, %45 : vector<128x8xf32>
    %47 = arith.truncf %46 : vector<128x8xf32> to vector<128x8xbf16>
    %c0_20 = arith.constant 0 : index
    %c0_21 = arith.constant 0 : index
    %48 = vector.load %arg4[%c0_20, %c0_21] : memref<8x32xbf16, #tpu.memory_space<vmem>>, vector<8x32xbf16>
    %cst_22 = arith.constant dense<0.000000e+00> : vector<128x32xf32>
    %49 = tpu.matmul %47, %48, %cst_22 {dimension_numbers = #tpu.dot_dimension_numbers<[1], [0], [0], [1], [0, 0, 1, 1], [], []>} : vector<128x8xbf16>, vector<8x32xbf16>, vector<128x32xf32> -> vector<128x32xf32>
    %c0_23 = arith.constant 0 : index
    %c0_24 = arith.constant 0 : index
    %50 = vector.load %arg9[%c0_23, %c0_24] : memref<1x32xf32, #tpu.memory_space<vmem>>, vector<1x32xf32>
    %51 = vector.broadcast %50 : vector<1x32xf32> to vector<128x32xf32>
    %52 = arith.mulf %49, %51 : vector<128x32xf32>
    %c0_25 = arith.constant 0 : index
    %c0_26 = arith.constant 0 : index
    %53 = vector.load %arg10[%c0_25, %c0_26] : memref<1x32xf32, #tpu.memory_space<vmem>>, vector<1x32xf32>
    %54 = vector.broadcast %53 : vector<1x32xf32> to vector<128x32xf32>
    %55 = arith.addf %52, %54 : vector<128x32xf32>
    %c0_27 = arith.constant 0 : index
    %c0_28 = arith.constant 0 : index
    %c0_29 = arith.constant 0 : index
    %c0_30 = arith.constant 0 : index
    %56 = vector.load %arg1[%c0_27, %c0_28, %c0_29, %c0_30] : memref<2x8x8x32xbf16, #tpu.memory_space<vmem>>, vector<2x8x8x32xbf16>
    %57 = vector.shape_cast %56 : vector<2x8x8x32xbf16> to vector<128x32xbf16>
    %58 = arith.extf %57 : vector<128x32xbf16> to vector<128x32xf32>
    %59 = arith.addf %55, %58 : vector<128x32xf32>
    %cst_31 = arith.constant 0.000000e+00 : f32
    %60 = vector.broadcast %cst_31 : f32 to vector<128x32xf32>
    %61 = arith.maximumf %59, %60 : vector<128x32xf32>
    %62 = vector.shape_cast %61 : vector<128x32xf32> to vector<2x8x8x32xf32>
    %c0_32 = arith.constant 0 : index
    %c0_33 = arith.constant 0 : index
    %c0_34 = arith.constant 0 : index
    %c0_35 = arith.constant 0 : index
    %63 = vector.load %arg11[%c0_32, %c0_33, %c0_34, %c0_35] : memref<2x8x8x32xf32, #tpu.memory_space<vmem>>, vector<2x8x8x32xf32>
    tpu.vector_store %arg11[%c0_32, %c0_33, %c0_34, %c0_35], %62 {strides = array<i32>} : memref<2x8x8x32xf32, #tpu.memory_space<vmem>>, vector<2x8x8x32xf32>,
    return
  }
  func.func @transform_0(%arg0: i32) -> (i32, i32, i32, i32) {
    %c0_i32 = arith.constant 0 : i32
    %c0_i32_0 = arith.constant 0 : i32
    %c0_i32_1 = arith.constant 0 : i32
    %c0_i32_2 = arith.constant 0 : i32
    return %arg0, %c0_i32, %c0_i32_0, %c0_i32_1 : i32, i32, i32, i32
  }
  func.func @transform_1(%arg0: i32) -> (i32, i32) {
    %c0_i32 = arith.constant 0 : i32
    %c0_i32_0 = arith.constant 0 : i32
    %c0_i32_1 = arith.constant 0 : i32
    return %c0_i32, %c0_i32_0 : i32, i32
  }
  func.func @transform_2(%arg0: i32) -> (i32, i32) {
    %c0_i32 = arith.constant 0 : i32
    %c0_i32_0 = arith.constant 0 : i32
    %c0_i32_1 = arith.constant 0 : i32
    return %c0_i32, %c0_i32_0 : i32, i32
  }
  func.func @transform_3(%arg0: i32) -> (i32, i32) {
    %c0_i32 = arith.constant 0 : i32
    %c0_i32_0 = arith.constant 0 : i32
    %c0_i32_1 = arith.constant 0 : i32
    return %c0_i32, %c0_i32_0 : i32, i32
  }
  func.func @transform_4(%arg0: i32) -> (i32, i32) {
    %c0_i32 = arith.constant 0 : i32
    %c0_i32_0 = arith.constant 0 : i32
    %c0_i32_1 = arith.constant 0 : i32
    return %c0_i32, %c0_i32_0 : i32, i32
  }
  func.func @transform_5(%arg0: i32) -> (i32, i32) {
    %c0_i32 = arith.constant 0 : i32
    %c0_i32_0 = arith.constant 0 : i32
    %c0_i32_1 = arith.constant 0 : i32
    return %c0_i32, %c0_i32_0 : i32, i32
  }
  func.func @transform_6(%arg0: i32) -> (i32, i32) {
    %c0_i32 = arith.constant 0 : i32
    %c0_i32_0 = arith.constant 0 : i32
    %c0_i32_1 = arith.constant 0 : i32
    return %c0_i32, %c0_i32_0 : i32, i32
  }
  func.func @transform_7(%arg0: i32) -> (i32, i32) {
    %c0_i32 = arith.constant 0 : i32
    %c0_i32_0 = arith.constant 0 : i32
    %c0_i32_1 = arith.constant 0 : i32
    return %c0_i32, %c0_i32_0 : i32, i32
  }
  func.func @transform_8(%arg0: i32) -> (i32, i32) {
    %c0_i32 = arith.constant 0 : i32
    %c0_i32_0 = arith.constant 0 : i32
    %c0_i32_1 = arith.constant 0 : i32
    return %c0_i32, %c0_i32_0 : i32, i32
  }
  func.func @transform_9(%arg0: i32) -> (i32, i32) {
    %c0_i32 = arith.constant 0 : i32
    %c0_i32_0 = arith.constant 0 : i32
    %c0_i32_1 = arith.constant 0 : i32
    return %c0_i32, %c0_i32_0 : i32, i32
  }
  func.func @transform_10(%arg0: i32) -> (i32, i32, i32, i32) {
    %c0_i32 = arith.constant 0 : i32
    %c0_i32_0 = arith.constant 0 : i32
    %c0_i32_1 = arith.constant 0 : i32
    %c0_i32_2 = arith.constant 0 : i32
    return %arg0, %c0_i32, %c0_i32_0, %c0_i32_1 : i32, i32, i32, i32
  }
}

</mosaic_0001>

<llo_original>
// kernel: tpu_custom_call.1
$region0: #{tpu_custom_call.1}
  #allocation0 [shape = 'u32[]', space=smem, size = 0x4, offset = 0x4, fixed_abs, tag = 'smem constant byte address 0x4 - core index']
  #allocation1 [shape = 'u32[144,128]{1,0:T(1,128)}', space=vmem, size = 0x12000, scoped, tag = 'internal scratch']
  %s0 = inlined_call_operand.hbm [shape: bf16[2,8,8,32], index: 0, kind: input, shape index: {}]
  %s1 = inlined_call_operand.vmem [shape: bf16[32,8], index: 1, kind: input, shape index: {}]
  %s2 = inlined_call_operand.vmem [shape: bf16[72,8], index: 2, kind: input, shape index: {}]
  %s3 = inlined_call_operand.vmem [shape: bf16[8,32], index: 3, kind: input, shape index: {}]
  %s4 = inlined_call_operand.vmem [shape: f32[1,8], index: 4, kind: input, shape index: {}]
  %s5 = inlined_call_operand.vmem [shape: f32[1,8], index: 5, kind: input, shape index: {}]
  %s6 = inlined_call_operand.vmem [shape: f32[1,8], index: 6, kind: input, shape index: {}]
  %s7 = inlined_call_operand.vmem [shape: f32[1,8], index: 7, kind: input, shape index: {}]
  %s8 = inlined_call_operand.vmem [shape: f32[1,32], index: 8, kind: input, shape index: {}]
  %s9 = inlined_call_operand.vmem [shape: f32[1,32], index: 9, kind: input, shape index: {}]
  %s10 = inlined_call_operand.hbm [shape: f32[2,8,8,32], index: 10, kind: output, shape index: {}]
  %s11 = sld [smem:[#allocation0]]
  $region54: #{tpu_custom_call.1} parent=0
    _
  %s13 = ssub.s32 1, %s11
  %s14 = scalar_select 0, %s13, %s11
  $region1: #{tpu_custom_call.1} parent=0
    #allocation2 [shape = 'u8[32768]{0}', space=vmem, size = 0x8000, scoped, tag = 'input window, operand 0, single buffered']
    #allocation3 [shape = 's32[1]{0}', space=sflag, size = 0x4, scoped, tag = 'scoped memory for tpu_custom_call.1']
    #allocation4 [shape = 's32[1]{0}', space=sflag, size = 0x4, scoped, tag = 'scoped memory for tpu_custom_call.1']
    #allocation5 [shape = 'u8[65536]{0}', space=vmem, size = 0x10000, scoped, tag = 'output window, operand 0, single buffered']
    %15 = vsyncpa [#allocation3], 0
    %16 = vsyncpa [#allocation4], 0
    // Predicated region
    $region2: #{tpu_custom_call.1} parent=1 // pred_check
      _
    $region3: #{tpu_custom_call.1} parent=1 // pred_check_branch
      %18 = sbr.rel (0) target = $region5
    $region4: #{tpu_custom_call.1} parent=1 // pred_region
      %s20 = ssub.s32 1024, 1024
      %21 = vsyncadd [#allocation3], %s20
      %s22 = sshll.u32 [#allocation2], 4
      %s23 = int_to_ptr.vmem [resolvable:$true] %s22
      %28 = dma.hbm_to_vmem [thread:$0]  %s0, 1024, %s23, [#allocation3], 64, 64, 4
    $region5: #{tpu_custom_call.1} parent=1 // pred_fallthru
      _
    // Predicated region
    $region6: #{tpu_custom_call.1} parent=1 // pred_check
      _
    $region7: #{tpu_custom_call.1} parent=1 // pred_check_branch
      %30 = sbr.rel (0) target = $region9
    $region8: #{tpu_custom_call.1} parent=1 // pred_region
      _
    $region9: #{tpu_custom_call.1} parent=1 // pred_fallthru
      _
    // Predicated region
    $region10: #{tpu_custom_call.1} parent=1 // pred_check
      _
    $region11: #{tpu_custom_call.1} parent=1 // pred_check_branch
      %32 = sbr.rel (0) target = $region13
    $region12: #{tpu_custom_call.1} parent=1 // pred_region
      _
    $region13: #{tpu_custom_call.1} parent=1 // pred_fallthru
      _
    // Predicated region
    $region14: #{tpu_custom_call.1} parent=1 // pred_check
      _
    $region15: #{tpu_custom_call.1} parent=1 // pred_check_branch
      %34 = sbr.rel (0) target = $region17
    $region16: #{tpu_custom_call.1} parent=1 // pred_region
      _
    $region17: #{tpu_custom_call.1} parent=1 // pred_fallthru
      _
    // Predicated region
    $region18: #{tpu_custom_call.1} parent=1 // pred_check
      _
    $region19: #{tpu_custom_call.1} parent=1 // pred_check_branch
      %36 = sbr.rel (0) target = $region21
    $region20: #{tpu_custom_call.1} parent=1 // pred_region
      _
    $region21: #{tpu_custom_call.1} parent=1 // pred_fallthru
      _
    // Predicated region
    $region22: #{tpu_custom_call.1} parent=1 // pred_check
      _
    $region23: #{tpu_custom_call.1} parent=1 // pred_check_branch
      %38 = sbr.rel (0) target = $region25
    $region24: #{tpu_custom_call.1} parent=1 // pred_region
      _
    $region25: #{tpu_custom_call.1} parent=1 // pred_fallthru
      _
    // Predicated region
    $region26: #{tpu_custom_call.1} parent=1 // pred_check
      _
    $region27: #{tpu_custom_call.1} parent=1 // pred_check_branch
      %40 = sbr.rel (0) target = $region29
    $region28: #{tpu_custom_call.1} parent=1 // pred_region
      _
    $region29: #{tpu_custom_call.1} parent=1 // pred_fallthru
      _
    // Predicated region
    $region30: #{tpu_custom_call.1} parent=1 // pred_check
      _
    $region31: #{tpu_custom_call.1} parent=1 // pred_check_branch
      %42 = sbr.rel (0) target = $region33
    $region32: #{tpu_custom_call.1} parent=1 // pred_region
      _
    $region33: #{tpu_custom_call.1} parent=1 // pred_fallthru
      _
    // Predicated region
    $region34: #{tpu_custom_call.1} parent=1 // pred_check
      _
    $region35: #{tpu_custom_call.1} parent=1 // pred_check_branch
      %44 = sbr.rel (0) target = $region37
    $region36: #{tpu_custom_call.1} parent=1 // pred_region
      _
    $region37: #{tpu_custom_call.1} parent=1 // pred_fallthru
      _
    // Predicated region
    $region38: #{tpu_custom_call.1} parent=1 // pred_check
      _
    $region39: #{tpu_custom_call.1} parent=1 // pred_check_branch
      %46 = sbr.rel (0) target = $region41
    $region40: #{tpu_custom_call.1} parent=1 // pred_region
      _
    $region41: #{tpu_custom_call.1} parent=1 // pred_fallthru
      _
    // Predicated region
    $region42: #{tpu_custom_call.1} parent=1 // pred_check
      _
    $region43: #{tpu_custom_call.1} parent=1 // pred_check_branch
      %48 = sbr.rel (0) target = $region45
    $region44: #{tpu_custom_call.1} parent=1 // pred_region
      %49 = dma.done [#allocation3], 1024
    $region45: #{tpu_custom_call.1} parent=1 // pred_fallthru
      _
    %v51 = vld [vmem:[#allocation2] sm:$0xf]
    %v52 = vld [vmem:[#allocation2 + $0x4] sm:$0xf]
    %v53 = vld [vmem:[#allocation2 + $0x8] sm:$0xf]
    %v54 = vld [vmem:[#allocation2 + $0xc] sm:$0xf]
    %v55 = vld [vmem:[#allocation2 + $0x10] sm:$0xf]
    %v56 = vld [vmem:[#allocation2 + $0x14] sm:$0xf]
    %v57 = vld [vmem:[#allocation2 + $0x18] sm:$0xf]
    %v58 = vld [vmem:[#allocation2 + $0x1c] sm:$0xf]
    %v59 = vld [vmem:[#allocation2 + $0x20] sm:$0xf]
    %v60 = vld [vmem:[#allocation2 + $0x24] sm:$0xf]
    %v61 = vld [vmem:[#allocation2 + $0x28] sm:$0xf]
    %v62 = vld [vmem:[#allocation2 + $0x2c] sm:$0xf]
    %v63 = vld [vmem:[#allocation2 + $0x30] sm:$0xf]
    %v64 = vld [vmem:[#allocation2 + $0x34] sm:$0xf]
    %v65 = vld [vmem:[#allocation2 + $0x38] sm:$0xf]
    %v66 = vld [vmem:[#allocation2 + $0x3c] sm:$0xf]
    %v67 = vld [vmem:[%s1] sm:$0xf]
    %v68 = vld [vmem:[%s1 + $0x4] sm:$0xf]
    %v69 = vld [vmem:[%s1 + $0x8] sm:$0xf]
    %v70 = vld [vmem:[%s1 + $0xc] sm:$0xf]
    %v87 = vunpack.c.l.b16 %v51
    %v88 = vunpack.c.l.b16 %v52
    %v89 = vunpack.c.l.b16 %v53
    %v90 = vunpack.c.l.b16 %v54
    %v91 = vunpack.c.l.b16 %v55
    %v92 = vunpack.c.l.b16 %v56
    %v93 = vunpack.c.l.b16 %v57
    %v94 = vunpack.c.l.b16 %v58
    %v95 = vunpack.c.l.b16 %v59
    %v96 = vunpack.c.l.b16 %v60
    %v97 = vunpack.c.l.b16 %v61
    %v98 = vunpack.c.l.b16 %v62
    %v99 = vunpack.c.l.b16 %v63
    %v100 = vunpack.c.l.b16 %v64
    %v101 = vunpack.c.l.b16 %v65
    %v102 = vunpack.c.l.b16 %v66
    %v103 = vpack.c.b16 %v88, %v87
    %v104 = vpack.c.b16 %v90, %v89
    %v105 = vpack.c.b16 %v92, %v91
    %v106 = vpack.c.b16 %v94, %v93
    %v107 = vpack.c.b16 %v96, %v95
    %v108 = vpack.c.b16 %v98, %v97
    %v109 = vpack.c.b16 %v100, %v99
    %v110 = vpack.c.b16 %v102, %v101
    %v115 = vunpack.c.l.b16 %v67
    %v116 = vunpack.c.l.b16 %v68
    %v117 = vunpack.c.l.b16 %v69
    %v118 = vunpack.c.l.b16 %v70
    %v119 = vpack.c.b16 %v116, %v115
    %v120 = vpack.c.b16 %v118, %v117
    %vm123 = vcmask 261120
    %v125 = vsel %vm123, %v103, 0
    %v128 = vsel %vm123, %v104, 0
    %v131 = vsel %vm123, %v105, 0
    %v134 = vsel %vm123, %v106, 0
    %v137 = vsel %vm123, %v107, 0
    %v140 = vsel %vm123, %v108, 0
    %v143 = vsel %vm123, %v109, 0
    %v146 = vsel %vm123, %v110, 0
    %148 = vmatprep.subr.bf16.mxu0 0
    %149 = vmatpush1.bf16.msra.mxu0 %v119
    %150 = vmatprep.subr.bf16.mxu0 0
    %151 = vmatpush1.bf16.msra.mxu0 %v120
    %152 = vmatprep.subr.bf16.mxu0 0
    %153 = vmatpush1.bf16.msra.mxu0 0
    %154 = vmatprep.subr.bf16.mxu0 0
    %155 = vmatpush1.bf16.msra.mxu0 0
    %156 = vmatprep.subr.bf16.mxu0 0
    %157 = vmatpush1.bf16.msra.mxu0 0
    %158 = vmatprep.subr.bf16.mxu0 0
    %159 = vmatpush1.bf16.msra.mxu0 0
    %160 = vmatprep.subr.bf16.mxu0 0
    %161 = vmatpush1.bf16.msra.mxu0 0
    %162 = vmatprep.subr.bf16.mxu0 0
    %163 = vmatpush1.bf16.msra.mxu0 0
    %164 = vmatprep.subr.bf16.mxu0 0
    %165 = vmatpush1.bf16.msra.mxu0 0
    %166 = vmatprep.subr.bf16.mxu0 0
    %167 = vmatpush1.bf16.msra.mxu0 0
    %168 = vmatprep.subr.bf16.mxu0 0
    %169 = vmatpush1.bf16.msra.mxu0 0
    %170 = vmatprep.subr.bf16.mxu0 0
    %171 = vmatpush1.bf16.msra.mxu0 0
    %172 = vmatprep.subr.bf16.mxu0 0
    %173 = vmatpush1.bf16.msra.mxu0 0
    %174 = vmatprep.subr.bf16.mxu0 0
    %175 = vmatpush1.bf16.msra.mxu0 0
    %176 = vmatprep.subr.bf16.mxu0 0
    %177 = vmatpush1.bf16.msra.mxu0 0
    %178 = vmatprep.subr.bf16.mxu0 0
    %179 = vmatpush1.bf16.msra.mxu0 0
    %180 = vmatprep.mubr.bf16.mxu0 0
    %181 = vmatmul.mubr.bf16.gmra.mrb[0].mxu0 %v125
    %v182 = vpop.f32.mrb[0].mxu0
    %v183 = vadd.f32 0.0, %v182
    %v184 = vpop.f32.mrb[0].mxu0
    %v185 = vpop.f32.mrb[0].mxu0
    %v186 = vadd.f32 0.0, %v185
    %v187 = vpop.f32.mrb[0].mxu0
    %188 = vmatprep.mubr.bf16.mxu0 0
    %189 = vmatmul.mubr.bf16.gmra.mrb[0].mxu0 %v128
    %v190 = vpop.f32.mrb[0].mxu0
    %v191 = vadd.f32 0.0, %v190
    %v192 = vpop.f32.mrb[0].mxu0
    %v193 = vpop.f32.mrb[0].mxu0
    %v194 = vadd.f32 0.0, %v193
    %v195 = vpop.f32.mrb[0].mxu0
    %196 = vmatprep.mubr.bf16.mxu0 0
    %197 = vmatmul.mubr.bf16.gmra.mrb[0].mxu0 %v131
    %v198 = vpop.f32.mrb[0].mxu0
    %v199 = vadd.f32 0.0, %v198
    %v200 = vpop.f32.mrb[0].mxu0
    %v201 = vpop.f32.mrb[0].mxu0
    %v202 = vadd.f32 0.0, %v201
    %v203 = vpop.f32.mrb[0].mxu0
    %204 = vmatprep.mubr.bf16.mxu0 0
    %205 = vmatmul.mubr.bf16.gmra.mrb[0].mxu0 %v134
    %v206 = vpop.f32.mrb[0].mxu0
    %v207 = vadd.f32 0.0, %v206
    %v208 = vpop.f32.mrb[0].mxu0
    %v209 = vpop.f32.mrb[0].mxu0
    %v210 = vadd.f32 0.0, %v209
    %v211 = vpop.f32.mrb[0].mxu0
    %212 = vmatprep.mubr.bf16.mxu0 0
    %213 = vmatmul.mubr.bf16.gmra.mrb[0].mxu0 %v137
    %v214 = vpop.f32.mrb[0].mxu0
    %v215 = vadd.f32 0.0, %v214
    %v216 = vpop.f32.mrb[0].mxu0
    %v217 = vpop.f32.mrb[0].mxu0
    %v218 = vadd.f32 0.0, %v217
    %v219 = vpop.f32.mrb[0].mxu0
    %220 = vmatprep.mubr.bf16.mxu0 0
    %221 = vmatmul.mubr.bf16.gmra.mrb[0].mxu0 %v140
    %v222 = vpop.f32.mrb[0].mxu0
    %v223 = vadd.f32 0.0, %v222
    %v224 = vpop.f32.mrb[0].mxu0
    %v225 = vpop.f32.mrb[0].mxu0
    %v226 = vadd.f32 0.0, %v225
    %v227 = vpop.f32.mrb[0].mxu0
    %228 = vmatprep.mubr.bf16.mxu0 0
    %229 = vmatmul.mubr.bf16.gmra.mrb[0].mxu0 %v143
    %v230 = vpop.f32.mrb[0].mxu0
    %v231 = vadd.f32 0.0, %v230
    %v232 = vpop.f32.mrb[0].mxu0
    %v233 = vpop.f32.mrb[0].mxu0
    %v234 = vadd.f32 0.0, %v233
    %v235 = vpop.f32.mrb[0].mxu0
    %236 = vmatprep.mubr.bf16.mxu0 0
    %237 = vmatmul.mubr.bf16.gmra.mrb[0].mxu0 %v146
    %v238 = vpop.f32.mrb[0].mxu0
    %v239 = vadd.f32 0.0, %v238
    %v240 = vpop.f32.mrb[0].mxu0
    %v241 = vpop.f32.mrb[0].mxu0
    %v242 = vadd.f32 0.0, %v241
    %v243 = vpop.f32.mrb[0].mxu0
    %244 = vdwg.mxu0
    %v245 = vld [vmem:[%s4] sm:$0x1]
    %v247 = vlaneseq
    %v248 = vshrl.u32 %v247, 7
    %v249 = vsub.s32 0, %v248
    %v250 = vrot.slane %v245, %v249
    %v252 = vmul.f32 %v183, %v250
    %v253 = vmul.f32 %v186, %v250
    %v254 = vmul.f32 %v191, %v250
    %v255 = vmul.f32 %v194, %v250
    %v256 = vmul.f32 %v199, %v250
    %v257 = vmul.f32 %v202, %v250
    %v258 = vmul.f32 %v207, %v250
    %v259 = vmul.f32 %v210, %v250
    %v260 = vmul.f32 %v215, %v250
    %v261 = vmul.f32 %v218, %v250
    %v262 = vmul.f32 %v223, %v250
    %v263 = vmul.f32 %v226, %v250
    %v264 = vmul.f32 %v231, %v250
    %v265 = vmul.f32 %v234, %v250
    %v266 = vmul.f32 %v239, %v250
    %v267 = vmul.f32 %v242, %v250
    %v268 = vld [vmem:[%s5] sm:$0x1]
    %v270 = vlaneseq
    %v271 = vshrl.u32 %v270, 7
    %v272 = vsub.s32 0, %v271
    %v273 = vrot.slane %v268, %v272
    %v275 = vadd.f32 %v252, %v273
    %v276 = vadd.f32 %v253, %v273
    %v277 = vadd.f32 %v254, %v273
    %v278 = vadd.f32 %v255, %v273
    %v279 = vadd.f32 %v256, %v273
    %v280 = vadd.f32 %v257, %v273
    %v281 = vadd.f32 %v258, %v273
    %v282 = vadd.f32 %v259, %v273
    %v283 = vadd.f32 %v260, %v273
    %v284 = vadd.f32 %v261, %v273
    %v285 = vadd.f32 %v262, %v273
    %v286 = vadd.f32 %v263, %v273
    %v287 = vadd.f32 %v264, %v273
    %v288 = vadd.f32 %v265, %v273
    %v289 = vadd.f32 %v266, %v273
    %v290 = vadd.f32 %v267, %v273
    %v291 = vmax.f32 %v275, 0.0
    %v292 = vmax.f32 %v276, 0.0
    %v293 = vmax.f32 %v277, 0.0
    %v294 = vmax.f32 %v278, 0.0
    %v295 = vmax.f32 %v279, 0.0
    %v296 = vmax.f32 %v280, 0.0
    %v297 = vmax.f32 %v281, 0.0
    %v298 = vmax.f32 %v282, 0.0
    %v299 = vmax.f32 %v283, 0.0
    %v300 = vmax.f32 %v284, 0.0
    %v301 = vmax.f32 %v285, 0.0
    %v302 = vmax.f32 %v286, 0.0
    %v303 = vmax.f32 %v287, 0.0
    %v304 = vmax.f32 %v288, 0.0
    %v305 = vmax.f32 %v289, 0.0
    %v306 = vmax.f32 %v290, 0.0
    %v324 = vrot.slane 0.0, 7
    %v325 = vrot.slane %v291, 7
    %v326 = vrot.slane %v292, 7
    %v327 = vrot.slane %v293, 7
    %v328 = vrot.slane %v294, 7
    %v329 = vrot.slane %v295, 7
    %v330 = vrot.slane %v296, 7
    %v331 = vrot.slane %v297, 7
    %v332 = vrot.slane %v298, 7
    %v333 = vrot.slane %v299, 7
    %v334 = vrot.slane %v300, 7
    %v335 = vrot.slane %v301, 7
    %v336 = vrot.slane %v302, 7
    %v337 = vrot.slane %v303, 7
    %v338 = vrot.slane %v304, 7
    %v339 = vrot.slane %v305, 7
    %v340 = vrot.slane %v306, 7
    %vm358 = vcmask 1040384
    %v359 = vsel %vm358, 0.0, %v324
    %v360 = vsel %vm358, 0.0, %v325
    %v361 = vsel %vm358, 0.0, %v326
    %v362 = vsel %vm358, 0.0, %v327
    %v363 = vsel %vm358, 0.0, %v328
    %v364 = vsel %vm358, 0.0, %v329
    %v365 = vsel %vm358, 0.0, %v330
    %v366 = vsel %vm358, 0.0, %v331
    %v367 = vsel %vm358, 0.0, %v332
    %v368 = vsel %vm358, 0.0, %v333
    %v369 = vsel %vm358, 0.0, %v334
    %v370 = vsel %vm358, 0.0, %v335
    %v371 = vsel %vm358, 0.0, %v336
    %v372 = vsel %vm358, 0.0, %v337
    %v373 = vsel %vm358, 0.0, %v338
    %v374 = vsel %vm358, 0.0, %v339
    %v375 = vsel %vm358, 0.0, %v340
    %v376 = vsel %vm358, %v324, 0.0
    %v377 = vsel %vm358, %v325, 0.0
    %v378 = vsel %vm358, %v326, 0.0
    %v379 = vsel %vm358, %v327, 0.0
    %v380 = vsel %vm358, %v328, 0.0
    %v381 = vsel %vm358, %v329, 0.0
    %v382 = vsel %vm358, %v330, 0.0
    %v383 = vsel %vm358, %v331, 0.0
    %v384 = vsel %vm358, %v332, 0.0
    %v385 = vsel %vm358, %v333, 0.0
    %v386 = vsel %vm358, %v334, 0.0
    %v387 = vsel %vm358, %v335, 0.0
    %v388 = vsel %vm358, %v336, 0.0
    %v389 = vsel %vm358, %v337, 0.0
    %v390 = vsel %vm358, %v338, 0.0
    %v391 = vsel %vm358, %v339, 0.0
    %v392 = vsel %vm358, %v340, 0.0
    %vm423 = vcmask 1046528
    %v424 = vrot.slane %v359, 1
    %v425 = vrot.slane %v376, 1
    %v426 = vsel %vm423, %v424, %v425
    %v427 = vrot.slane %v360, 1
    %v428 = vrot.slane %v377, 1
    %v429 = vsel %vm423, %v427, %v428
    %v430 = vrot.slane %v361, 1
    %v431 = vrot.slane %v378, 1
    %v432 = vsel %vm423, %v430, %v431
    %v433 = vrot.slane %v362, 1
    %v434 = vrot.slane %v379, 1
    %v435 = vsel %vm423, %v433, %v434
    %v436 = vrot.slane %v363, 1
    %v437 = vrot.slane %v380, 1
    %v438 = vsel %vm423, %v436, %v437
    %v439 = vrot.slane %v364, 1
    %v440 = vrot.slane %v381, 1
    %v441 = vsel %vm423, %v439, %v440
    %v442 = vrot.slane %v365, 1
    %v443 = vrot.slane %v382, 1
    %v444 = vsel %vm423, %v442, %v443
    %v445 = vrot.slane %v366, 1
    %v446 = vrot.slane %v383, 1
    %v447 = vsel %vm423, %v445, %v446
    %v448 = vrot.slane %v368, 1
    %v449 = vrot.slane %v385, 1
    %v450 = vsel %vm423, %v448, %v449
    %v451 = vrot.slane %v369, 1
    %v452 = vrot.slane %v386, 1
    %v453 = vsel %vm423, %v451, %v452
    %v454 = vrot.slane %v370, 1
    %v455 = vrot.slane %v387, 1
    %v456 = vsel %vm423, %v454, %v455
    %v457 = vrot.slane %v371, 1
    %v458 = vrot.slane %v388, 1
    %v459 = vsel %vm423, %v457, %v458
    %v460 = vrot.slane %v372, 1
    %v461 = vrot.slane %v389, 1
    %v462 = vsel %vm423, %v460, %v461
    %v463 = vrot.slane %v373, 1
    %v464 = vrot.slane %v390, 1
    %v465 = vsel %vm423, %v463, %v464
    %v466 = vrot.slane %v374, 1
    %v467 = vrot.slane %v391, 1
    %v468 = vsel %vm423, %v466, %v467
    %vm469 = vcmask 1045504
    %v470 = vrot.slane %v359, 2
    %v471 = vrot.slane %v376, 2
    %v472 = vsel %vm469, %v470, %v471
    %v473 = vrot.slane %v360, 2
    %v474 = vrot.slane %v377, 2
    %v475 = vsel %vm469, %v473, %v474
    %v476 = vrot.slane %v361, 2
    %v477 = vrot.slane %v378, 2
    %v478 = vsel %vm469, %v476, %v477
    %v479 = vrot.slane %v362, 2
    %v480 = vrot.slane %v379, 2
    %v481 = vsel %vm469, %v479, %v480
    %v482 = vrot.slane %v363, 2
    %v483 = vrot.slane %v380, 2
    %v484 = vsel %vm469, %v482, %v483
    %v485 = vrot.slane %v364, 2
    %v486 = vrot.slane %v381, 2
    %v487 = vsel %vm469, %v485, %v486
    %v488 = vrot.slane %v365, 2
    %v489 = vrot.slane %v382, 2
    %v490 = vsel %vm469, %v488, %v489
    %v491 = vrot.slane %v366, 2
    %v492 = vrot.slane %v383, 2
    %v493 = vsel %vm469, %v491, %v492
    %v494 = vrot.slane %v368, 2
    %v495 = vrot.slane %v385, 2
    %v496 = vsel %vm469, %v494, %v495
    %v497 = vrot.slane %v369, 2
    %v498 = vrot.slane %v386, 2
    %v499 = vsel %vm469, %v497, %v498
    %v500 = vrot.slane %v370, 2
    %v501 = vrot.slane %v387, 2
    %v502 = vsel %vm469, %v500, %v501
    %v503 = vrot.slane %v371, 2
    %v504 = vrot.slane %v388, 2
    %v505 = vsel %vm469, %v503, %v504
    %v506 = vrot.slane %v372, 2
    %v507 = vrot.slane %v389, 2
    %v508 = vsel %vm469, %v506, %v507
    %v509 = vrot.slane %v373, 2
    %v510 = vrot.slane %v390, 2
    %v511 = vsel %vm469, %v509, %v510
    %v512 = vrot.slane %v374, 2
    %v513 = vrot.slane %v391, 2
    %v514 = vsel %vm469, %v512, %v513
    %v519 = vrot.slane %v367, 1
    %v520 = vrot.slane %v384, 1
    %v521 = vsel %vm423, %v519, %v520
    %v522 = vrot.slane %v375, 1
    %v523 = vrot.slane %v392, 1
    %v524 = vsel %vm423, %v522, %v523
    %v525 = vrot.slane %v367, 2
    %v526 = vrot.slane %v384, 2
    %v527 = vsel %vm469, %v525, %v526
    %v528 = vrot.slane %v375, 2
    %v529 = vrot.slane %v392, 2
    %v530 = vsel %vm469, %v528, %v529
    %531 = vrot.lane.b32.xlu0 %v426, 8
    %v532 = vpop.permute.xlu0 %531
    %533 = vrot.lane.b32.xlu0 %v429, 8
    %v534 = vpop.permute.xlu0 %533
    %535 = vrot.lane.b32.xlu0 %v432, 8
    %v536 = vpop.permute.xlu0 %535
    %537 = vrot.lane.b32.xlu0 %v435, 8
    %v538 = vpop.permute.xlu0 %537
    %539 = vrot.lane.b32.xlu0 %v438, 8
    %v540 = vpop.permute.xlu0 %539
    %541 = vrot.lane.b32.xlu0 %v441, 8
    %v542 = vpop.permute.xlu0 %541
    %543 = vrot.lane.b32.xlu0 %v444, 8
    %v544 = vpop.permute.xlu0 %543
    %545 = vrot.lane.b32.xlu0 %v447, 8
    %v546 = vpop.permute.xlu0 %545
    %547 = vrot.lane.b32.xlu0 %v450, 8
    %v548 = vpop.permute.xlu0 %547
    %549 = vrot.lane.b32.xlu0 %v453, 8
    %v550 = vpop.permute.xlu0 %549
    %551 = vrot.lane.b32.xlu0 %v456, 8
    %v552 = vpop.permute.xlu0 %551
    %553 = vrot.lane.b32.xlu0 %v459, 8
    %v554 = vpop.permute.xlu0 %553
    %555 = vrot.lane.b32.xlu0 %v462, 8
    %v556 = vpop.permute.xlu0 %555
    %557 = vrot.lane.b32.xlu0 %v465, 8
    %v558 = vpop.permute.xlu0 %557
    %559 = vrot.lane.b32.xlu0 %v468, 8
    %v560 = vpop.permute.xlu0 %559
    %576 = vrot.lane.b32.xlu0 %v472, 16
    %v577 = vpop.permute.xlu0 %576
    %578 = vrot.lane.b32.xlu0 %v475, 16
    %v579 = vpop.permute.xlu0 %578
    %580 = vrot.lane.b32.xlu0 %v478, 16
    %v581 = vpop.permute.xlu0 %580
    %582 = vrot.lane.b32.xlu0 %v481, 16
    %v583 = vpop.permute.xlu0 %582
    %584 = vrot.lane.b32.xlu0 %v484, 16
    %v585 = vpop.permute.xlu0 %584
    %586 = vrot.lane.b32.xlu0 %v487, 16
    %v587 = vpop.permute.xlu0 %586
    %588 = vrot.lane.b32.xlu0 %v490, 16
    %v589 = vpop.permute.xlu0 %588
    %590 = vrot.lane.b32.xlu0 %v493, 16
    %v591 = vpop.permute.xlu0 %590
    %592 = vrot.lane.b32.xlu0 %v496, 16
    %v593 = vpop.permute.xlu0 %592
    %594 = vrot.lane.b32.xlu0 %v499, 16
    %v595 = vpop.permute.xlu0 %594
    %596 = vrot.lane.b32.xlu0 %v502, 16
    %v597 = vpop.permute.xlu0 %596
    %598 = vrot.lane.b32.xlu0 %v505, 16
    %v599 = vpop.permute.xlu0 %598
    %600 = vrot.lane.b32.xlu0 %v508, 16
    %v601 = vpop.permute.xlu0 %600
    %602 = vrot.lane.b32.xlu0 %v511, 16
    %v603 = vpop.permute.xlu0 %602
    %604 = vrot.lane.b32.xlu0 %v514, 16
    %v605 = vpop.permute.xlu0 %604
    %621 = vrot.lane.b32.xlu0 %v360, 24
    %v622 = vpop.permute.xlu0 %621
    %623 = vrot.lane.b32.xlu0 %v361, 24
    %v624 = vpop.permute.xlu0 %623
    %625 = vrot.lane.b32.xlu0 %v362, 24
    %v626 = vpop.permute.xlu0 %625
    %627 = vrot.lane.b32.xlu0 %v363, 24
    %v628 = vpop.permute.xlu0 %627
    %629 = vrot.lane.b32.xlu0 %v364, 24
    %v630 = vpop.permute.xlu0 %629
    %631 = vrot.lane.b32.xlu0 %v365, 24
    %v632 = vpop.permute.xlu0 %631
    %633 = vrot.lane.b32.xlu0 %v366, 24
    %v634 = vpop.permute.xlu0 %633
    %635 = vrot.lane.b32.xlu0 %v367, 24
    %v636 = vpop.permute.xlu0 %635
    %637 = vrot.lane.b32.xlu0 %v368, 24
    %v638 = vpop.permute.xlu0 %637
    %639 = vrot.lane.b32.xlu0 %v369, 24
    %v640 = vpop.permute.xlu0 %639
    %641 = vrot.lane.b32.xlu0 %v370, 24
    %v642 = vpop.permute.xlu0 %641
    %643 = vrot.lane.b32.xlu0 %v371, 24
    %v644 = vpop.permute.xlu0 %643
    %645 = vrot.lane.b32.xlu0 %v372, 24
    %v646 = vpop.permute.xlu0 %645
    %647 = vrot.lane.b32.xlu0 %v373, 24
    %v648 = vpop.permute.xlu0 %647
    %649 = vrot.lane.b32.xlu0 %v374, 24
    %v650 = vpop.permute.xlu0 %649
    %651 = vrot.lane.b32.xlu0 %v375, 24
    %v652 = vpop.permute.xlu0 %651
    %669 = vrot.lane.b32.xlu0 %v429, 32
    %v670 = vpop.permute.xlu0 %669
    %671 = vrot.lane.b32.xlu0 %v432, 32
    %v672 = vpop.permute.xlu0 %671
    %673 = vrot.lane.b32.xlu0 %v435, 32
    %v674 = vpop.permute.xlu0 %673
    %675 = vrot.lane.b32.xlu0 %v438, 32
    %v676 = vpop.permute.xlu0 %675
    %677 = vrot.lane.b32.xlu0 %v441, 32
    %v678 = vpop.permute.xlu0 %677
    %679 = vrot.lane.b32.xlu0 %v444, 32
    %v680 = vpop.permute.xlu0 %679
    %681 = vrot.lane.b32.xlu0 %v447, 32
    %v682 = vpop.permute.xlu0 %681
    %683 = vrot.lane.b32.xlu0 %v521, 32
    %v684 = vpop.permute.xlu0 %683
    %685 = vrot.lane.b32.xlu0 %v450, 32
    %v686 = vpop.permute.xlu0 %685
    %687 = vrot.lane.b32.xlu0 %v453, 32
    %v688 = vpop.permute.xlu0 %687
    %689 = vrot.lane.b32.xlu0 %v456, 32
    %v690 = vpop.permute.xlu0 %689
    %691 = vrot.lane.b32.xlu0 %v459, 32
    %v692 = vpop.permute.xlu0 %691
    %693 = vrot.lane.b32.xlu0 %v462, 32
    %v694 = vpop.permute.xlu0 %693
    %695 = vrot.lane.b32.xlu0 %v465, 32
    %v696 = vpop.permute.xlu0 %695
    %697 = vrot.lane.b32.xlu0 %v468, 32
    %v698 = vpop.permute.xlu0 %697
    %699 = vrot.lane.b32.xlu0 %v524, 32
    %v700 = vpop.permute.xlu0 %699
    %717 = vrot.lane.b32.xlu0 %v475, 40
    %v718 = vpop.permute.xlu0 %717
    %719 = vrot.lane.b32.xlu0 %v478, 40
    %v720 = vpop.permute.xlu0 %719
    %721 = vrot.lane.b32.xlu0 %v481, 40
    %v722 = vpop.permute.xlu0 %721
    %723 = vrot.lane.b32.xlu0 %v484, 40
    %v724 = vpop.permute.xlu0 %723
    %725 = vrot.lane.b32.xlu0 %v487, 40
    %v726 = vpop.permute.xlu0 %725
    %727 = vrot.lane.b32.xlu0 %v490, 40
    %v728 = vpop.permute.xlu0 %727
    %729 = vrot.lane.b32.xlu0 %v493, 40
    %v730 = vpop.permute.xlu0 %729
    %731 = vrot.lane.b32.xlu0 %v527, 40
    %v732 = vpop.permute.xlu0 %731
    %733 = vrot.lane.b32.xlu0 %v496, 40
    %v734 = vpop.permute.xlu0 %733
    %735 = vrot.lane.b32.xlu0 %v499, 40
    %v736 = vpop.permute.xlu0 %735
    %737 = vrot.lane.b32.xlu0 %v502, 40
    %v738 = vpop.permute.xlu0 %737
    %739 = vrot.lane.b32.xlu0 %v505, 40
    %v740 = vpop.permute.xlu0 %739
    %741 = vrot.lane.b32.xlu0 %v508, 40
    %v742 = vpop.permute.xlu0 %741
    %743 = vrot.lane.b32.xlu0 %v511, 40
    %v744 = vpop.permute.xlu0 %743
    %745 = vrot.lane.b32.xlu0 %v514, 40
    %v746 = vpop.permute.xlu0 %745
    %747 = vrot.lane.b32.xlu0 %v530, 40
    %v748 = vpop.permute.xlu0 %747
    %765 = vrot.lane.b32.xlu0 %v361, 48
    %v766 = vpop.permute.xlu0 %765
    %767 = vrot.lane.b32.xlu0 %v362, 48
    %v768 = vpop.permute.xlu0 %767
    %769 = vrot.lane.b32.xlu0 %v363, 48
    %v770 = vpop.permute.xlu0 %769
    %771 = vrot.lane.b32.xlu0 %v364, 48
    %v772 = vpop.permute.xlu0 %771
    %773 = vrot.lane.b32.xlu0 %v365, 48
    %v774 = vpop.permute.xlu0 %773
    %775 = vrot.lane.b32.xlu0 %v366, 48
    %v776 = vpop.permute.xlu0 %775
    %777 = vrot.lane.b32.xlu0 %v367, 48
    %v778 = vpop.permute.xlu0 %777
    %779 = vrot.lane.b32.xlu0 %v359, 48
    %v780 = vpop.permute.xlu0 %779
    %781 = vrot.lane.b32.xlu0 %v369, 48
    %v782 = vpop.permute.xlu0 %781
    %783 = vrot.lane.b32.xlu0 %v370, 48
    %v784 = vpop.permute.xlu0 %783
    %785 = vrot.lane.b32.xlu0 %v371, 48
    %v786 = vpop.permute.xlu0 %785
    %787 = vrot.lane.b32.xlu0 %v372, 48
    %v788 = vpop.permute.xlu0 %787
    %789 = vrot.lane.b32.xlu0 %v373, 48
    %v790 = vpop.permute.xlu0 %789
    %791 = vrot.lane.b32.xlu0 %v374, 48
    %v792 = vpop.permute.xlu0 %791
    %793 = vrot.lane.b32.xlu0 %v375, 48
    %v794 = vpop.permute.xlu0 %793
    %810 = vrot.lane.b32.xlu0 %v432, 56
    %v811 = vpop.permute.xlu0 %810
    %812 = vrot.lane.b32.xlu0 %v435, 56
    %v813 = vpop.permute.xlu0 %812
    %814 = vrot.lane.b32.xlu0 %v438, 56
    %v815 = vpop.permute.xlu0 %814
    %816 = vrot.lane.b32.xlu0 %v441, 56
    %v817 = vpop.permute.xlu0 %816
    %818 = vrot.lane.b32.xlu0 %v444, 56
    %v819 = vpop.permute.xlu0 %818
    %820 = vrot.lane.b32.xlu0 %v447, 56
    %v821 = vpop.permute.xlu0 %820
    %822 = vrot.lane.b32.xlu0 %v521, 56
    %v823 = vpop.permute.xlu0 %822
    %824 = vrot.lane.b32.xlu0 %v426, 56
    %v825 = vpop.permute.xlu0 %824
    %826 = vrot.lane.b32.xlu0 %v453, 56
    %v827 = vpop.permute.xlu0 %826
    %828 = vrot.lane.b32.xlu0 %v456, 56
    %v829 = vpop.permute.xlu0 %828
    %830 = vrot.lane.b32.xlu0 %v459, 56
    %v831 = vpop.permute.xlu0 %830
    %832 = vrot.lane.b32.xlu0 %v462, 56
    %v833 = vpop.permute.xlu0 %832
    %834 = vrot.lane.b32.xlu0 %v465, 56
    %v835 = vpop.permute.xlu0 %834
    %836 = vrot.lane.b32.xlu0 %v468, 56
    %v837 = vpop.permute.xlu0 %836
    %838 = vrot.lane.b32.xlu0 %v524, 56
    %v839 = vpop.permute.xlu0 %838
    %855 = vrot.lane.b32.xlu0 %v478, 64
    %v856 = vpop.permute.xlu0 %855
    %857 = vrot.lane.b32.xlu0 %v481, 64
    %v858 = vpop.permute.xlu0 %857
    %859 = vrot.lane.b32.xlu0 %v484, 64
    %v860 = vpop.permute.xlu0 %859
    %861 = vrot.lane.b32.xlu0 %v487, 64
    %v862 = vpop.permute.xlu0 %861
    %863 = vrot.lane.b32.xlu0 %v490, 64
    %v864 = vpop.permute.xlu0 %863
    %865 = vrot.lane.b32.xlu0 %v493, 64
    %v866 = vpop.permute.xlu0 %865
    %867 = vrot.lane.b32.xlu0 %v527, 64
    %v868 = vpop.permute.xlu0 %867
    %869 = vrot.lane.b32.xlu0 %v472, 64
    %v870 = vpop.permute.xlu0 %869
    %871 = vrot.lane.b32.xlu0 %v499, 64
    %v872 = vpop.permute.xlu0 %871
    %873 = vrot.lane.b32.xlu0 %v502, 64
    %v874 = vpop.permute.xlu0 %873
    %875 = vrot.lane.b32.xlu0 %v505, 64
    %v876 = vpop.permute.xlu0 %875
    %877 = vrot.lane.b32.xlu0 %v508, 64
    %v878 = vpop.permute.xlu0 %877
    %879 = vrot.lane.b32.xlu0 %v511, 64
    %v880 = vpop.permute.xlu0 %879
    %881 = vrot.lane.b32.xlu0 %v514, 64
    %v882 = vpop.permute.xlu0 %881
    %883 = vrot.lane.b32.xlu0 %v530, 64
    %v884 = vpop.permute.xlu0 %883
    %vm900 = vcmask 64512
    %v901 = vsel %vm900, %v359, %v532
    %v902 = vsel %vm900, %v360, %v534
    %v903 = vsel %vm900, %v361, %v536
    %v904 = vsel %vm900, %v362, %v538
    %v905 = vsel %vm900, %v363, %v540
    %v906 = vsel %vm900, %v364, %v542
    %v907 = vsel %vm900, %v365, %v544
    %v908 = vsel %vm900, %v366, %v546
    %v909 = vsel %vm900, %v368, %v548
    %v910 = vsel %vm900, %v369, %v550
    %v911 = vsel %vm900, %v370, %v552
    %v912 = vsel %vm900, %v371, %v554
    %v913 = vsel %vm900, %v372, %v556
    %v914 = vsel %vm900, %v373, %v558
    %v915 = vsel %vm900, %v374, %v560
    %vm916 = vcmask 130048
    %v917 = vsel %vm916, %v901, %v577
    %v918 = vsel %vm916, %v902, %v579
    %v919 = vsel %vm916, %v903, %v581
    %v920 = vsel %vm916, %v904, %v583
    %v921 = vsel %vm916, %v905, %v585
    %v922 = vsel %vm916, %v906, %v587
    %v923 = vsel %vm916, %v907, %v589
    %v924 = vsel %vm916, %v908, %v591
    %v925 = vsel %vm916, %v909, %v593
    %v926 = vsel %vm916, %v910, %v595
    %v927 = vsel %vm916, %v911, %v597
    %v928 = vsel %vm916, %v912, %v599
    %v929 = vsel %vm916, %v913, %v601
    %v930 = vsel %vm916, %v914, %v603
    %v931 = vsel %vm916, %v915, %v605
    %vm932 = vcmask 195584
    %v933 = vsel %vm932, %v917, %v622
    %v934 = vsel %vm932, %v918, %v624
    %v935 = vsel %vm932, %v919, %v626
    %v936 = vsel %vm932, %v920, %v628
    %v937 = vsel %vm932, %v921, %v630
    %v938 = vsel %vm932, %v922, %v632
    %v939 = vsel %vm932, %v923, %v634
    %v940 = vsel %vm932, %v924, %v636
    %v941 = vsel %vm932, %v917, %v638
    %v942 = vsel %vm932, %v925, %v640
    %v943 = vsel %vm932, %v926, %v642
    %v944 = vsel %vm932, %v927, %v644
    %v945 = vsel %vm932, %v928, %v646
    %v946 = vsel %vm932, %v929, %v648
    %v947 = vsel %vm932, %v930, %v650
    %v948 = vsel %vm932, %v931, %v652
    %v949 = vsel %vm123, %v933, %v670
    %v950 = vsel %vm123, %v934, %v672
    %v951 = vsel %vm123, %v935, %v674
    %v952 = vsel %vm123, %v936, %v676
    %v953 = vsel %vm123, %v937, %v678
    %v954 = vsel %vm123, %v938, %v680
    %v955 = vsel %vm123, %v939, %v682
    %v956 = vsel %vm123, %v940, %v684
    %v957 = vsel %vm123, %v941, %v686
    %v958 = vsel %vm123, %v942, %v688
    %v959 = vsel %vm123, %v943, %v690
    %v960 = vsel %vm123, %v944, %v692
    %v961 = vsel %vm123, %v945, %v694
    %v962 = vsel %vm123, %v946, %v696
    %v963 = vsel %vm123, %v947, %v698
    %v964 = vsel %vm123, %v948, %v700
    %vm965 = vcmask 326656
    %v966 = vsel %vm965, %v949, %v718
    %v967 = vsel %vm965, %v950, %v720
    %v968 = vsel %vm965, %v951, %v722
    %v969 = vsel %vm965, %v952, %v724
    %v970 = vsel %vm965, %v953, %v726
    %v971 = vsel %vm965, %v954, %v728
    %v972 = vsel %vm965, %v955, %v730
    %v973 = vsel %vm965, %v956, %v732
    %v974 = vsel %vm965, %v957, %v734
    %v975 = vsel %vm965, %v958, %v736
    %v976 = vsel %vm965, %v959, %v738
    %v977 = vsel %vm965, %v960, %v740
    %v978 = vsel %vm965, %v961, %v742
    %v979 = vsel %vm965, %v962, %v744
    %v980 = vsel %vm965, %v963, %v746
    %v981 = vsel %vm965, %v964, %v748
    %vm982 = vcmask 392192
    %v983 = vsel %vm982, %v966, %v766
    %v984 = vsel %vm982, %v967, %v768
    %v985 = vsel %vm982, %v968, %v770
    %v986 = vsel %vm982, %v969, %v772
    %v987 = vsel %vm982, %v970, %v774
    %v988 = vsel %vm982, %v971, %v776
    %v989 = vsel %vm982, %v972, %v778
    %v990 = vsel %vm982, %v973, %v780
    %v991 = vsel %vm982, %v974, %v782
    %v992 = vsel %vm982, %v975, %v784
    %v993 = vsel %vm982, %v976, %v786
    %v994 = vsel %vm982, %v977, %v788
    %v995 = vsel %vm982, %v978, %v790
    %v996 = vsel %vm982, %v979, %v792
    %v997 = vsel %vm982, %v980, %v794
    %v998 = vsel %vm982, %v981, %v780
    %vm999 = vcmask 457728
    %v1000 = vsel %vm999, %v983, %v811
    %v1001 = vsel %vm999, %v984, %v813
    %v1002 = vsel %vm999, %v985, %v815
    %v1003 = vsel %vm999, %v986, %v817
    %v1004 = vsel %vm999, %v987, %v819
    %v1005 = vsel %vm999, %v988, %v821
    %v1006 = vsel %vm999, %v989, %v823
    %v1007 = vsel %vm999, %v990, %v825
    %v1008 = vsel %vm999, %v991, %v827
    %v1009 = vsel %vm999, %v992, %v829
    %v1010 = vsel %vm999, %v993, %v831
    %v1011 = vsel %vm999, %v994, %v833
    %v1012 = vsel %vm999, %v995, %v835
    %v1013 = vsel %vm999, %v996, %v837
    %v1014 = vsel %vm999, %v997, %v839
    %v1015 = vsel %vm999, %v998, %v825
    %vm1016 = vcmask 523264
    %v1017 = vsel %vm1016, %v1000, %v856
    %v1018 = vsel %vm1016, %v1001, %v858
    %v1019 = vsel %vm1016, %v1002, %v860
    %v1020 = vsel %vm1016, %v1003, %v862
    %v1021 = vsel %vm1016, %v1004, %v864
    %v1022 = vsel %vm1016, %v1005, %v866
    %v1023 = vsel %vm1016, %v1006, %v868
    %v1024 = vsel %vm1016, %v1007, %v870
    %v1025 = vsel %vm1016, %v1008, %v872
    %v1026 = vsel %vm1016, %v1009, %v874
    %v1027 = vsel %vm1016, %v1010, %v876
    %v1028 = vsel %vm1016, %v1011, %v878
    %v1029 = vsel %vm1016, %v1012, %v880
    %v1030 = vsel %vm1016, %v1013, %v882
    %v1031 = vsel %vm1016, %v1014, %v884
    %v1032 = vsel %vm1016, %v1015, %v870
    %v1033 = vpack.c.bf16 %v1018, %v1017
    %v1034 = vpack.c.bf16 %v1020, %v1019
    %v1035 = vpack.c.bf16 %v1022, %v1021
    %v1036 = vpack.c.bf16 %v1024, %v1023
    %v1037 = vpack.c.bf16 %v1026, %v1025
    %v1038 = vpack.c.bf16 %v1028, %v1027
    %v1039 = vpack.c.bf16 %v1030, %v1029
    %v1040 = vpack.c.bf16 %v1032, %v1031
    %v1041 = vld [vmem:[%s2] sm:$0xf]
    %v1042 = vld [vmem:[%s2 + $0x4] sm:$0xf]
    %v1043 = vld [vmem:[%s2 + $0x8] sm:$0xf]
    %v1044 = vld [vmem:[%s2 + $0xc] sm:$0xf]
    %v1045 = vld [vmem:[%s2 + $0x10] sm:$0xf]
    %v1046 = vld [vmem:[%s2 + $0x14] sm:$0xf]
    %v1047 = vld [vmem:[%s2 + $0x18] sm:$0xf]
    %v1048 = vld [vmem:[%s2 + $0x1c] sm:$0xf]
    %v1049 = vld [vmem:[%s2 + $0x20] sm:$0xf]
    %v1059 = vunpack.c.l.b16 %v1041
    %v1060 = vunpack.c.l.b16 %v1042
    %v1061 = vunpack.c.l.b16 %v1043
    %v1062 = vunpack.c.l.b16 %v1044
    %v1063 = vunpack.c.l.b16 %v1045
    %v1064 = vunpack.c.l.b16 %v1046
    %v1065 = vunpack.c.l.b16 %v1047
    %v1066 = vunpack.c.l.b16 %v1048
    %v1067 = vunpack.c.l.b16 %v1049
    %v1068 = vpack.c.b16 %v1060, %v1059
    %v1069 = vpack.c.b16 %v1062, %v1061
    %v1070 = vpack.c.b16 %v1064, %v1063
    %v1071 = vpack.c.b16 %v1066, %v1065
    %v1072 = vpack.c.b16 %v1067, %v1067
    %vm1077 = vcmask 588800
    %v1079 = vsel %vm1077, %v1033, 0
    %v1082 = vsel %vm1077, %v1034, 0
    %v1085 = vsel %vm1077, %v1035, 0
    %v1088 = vsel %vm1077, %v1036, 0
    %v1091 = vsel %vm1077, %v1037, 0
    %v1094 = vsel %vm1077, %v1038, 0
    %v1097 = vsel %vm1077, %v1039, 0
    %v1100 = vsel %vm1077, %v1040, 0
    %vm1102 = vcmask 1043456
    %v1104 = vsel %vm1102, %v1072, 0
    %1106 = vmatprep.subr.bf16.mxu0 0
    %1107 = vmatpush1.bf16.msra.mxu0 %v1068
    %1108 = vmatprep.subr.bf16.mxu0 0
    %1109 = vmatpush1.bf16.msra.mxu0 %v1069
    %1110 = vmatprep.subr.bf16.mxu0 0
    %1111 = vmatpush1.bf16.msra.mxu0 %v1070
    %1112 = vmatprep.subr.bf16.mxu0 0
    %1113 = vmatpush1.bf16.msra.mxu0 %v1071
    %1114 = vmatprep.subr.bf16.mxu0 0
    %1115 = vmatpush1.bf16.msra.mxu0 %v1104
    %1116 = vmatprep.subr.bf16.mxu0 0
    %1117 = vmatpush1.bf16.msra.mxu0 0
    %1118 = vmatprep.subr.bf16.mxu0 0
    %1119 = vmatpush1.bf16.msra.mxu0 0
    %1120 = vmatprep.subr.bf16.mxu0 0
    %1121 = vmatpush1.bf16.msra.mxu0 0
    %1122 = vmatprep.subr.bf16.mxu0 0
    %1123 = vmatpush1.bf16.msra.mxu0 0
    %1124 = vmatprep.subr.bf16.mxu0 0
    %1125 = vmatpush1.bf16.msra.mxu0 0
    %1126 = vmatprep.subr.bf16.mxu0 0
    %1127 = vmatpush1.bf16.msra.mxu0 0
    %1128 = vmatprep.subr.bf16.mxu0 0
    %1129 = vmatpush1.bf16.msra.mxu0 0
    %1130 = vmatprep.subr.bf16.mxu0 0
    %1131 = vmatpush1.bf16.msra.mxu0 0
    %1132 = vmatprep.subr.bf16.mxu0 0
    %1133 = vmatpush1.bf16.msra.mxu0 0
    %1134 = vmatprep.subr.bf16.mxu0 0
    %1135 = vmatpush1.bf16.msra.mxu0 0
    %1136 = vmatprep.subr.bf16.mxu0 0
    %1137 = vmatpush1.bf16.msra.mxu0 0
    %1138 = vmatprep.mubr.bf16.mxu0 0
    %1139 = vmatmul.mubr.bf16.gmra.mrb[0].mxu0 %v1079
    %v1140 = vpop.f32.mrb[0].mxu0
    %v1141 = vadd.f32 0.0, %v1140
    %v1142 = vpop.f32.mrb[0].mxu0
    %v1143 = vpop.f32.mrb[0].mxu0
    %v1144 = vadd.f32 0.0, %v1143
    %v1145 = vpop.f32.mrb[0].mxu0
    %1146 = vmatprep.mubr.bf16.mxu0 0
    %1147 = vmatmul.mubr.bf16.gmra.mrb[0].mxu0 %v1082
    %v1148 = vpop.f32.mrb[0].mxu0
    %v1149 = vadd.f32 0.0, %v1148
    %v1150 = vpop.f32.mrb[0].mxu0
    %v1151 = vpop.f32.mrb[0].mxu0
    %v1152 = vadd.f32 0.0, %v1151
    %v1153 = vpop.f32.mrb[0].mxu0
    %1154 = vmatprep.mubr.bf16.mxu0 0
    %1155 = vmatmul.mubr.bf16.gmra.mrb[0].mxu0 %v1085
    %v1156 = vpop.f32.mrb[0].mxu0
    %v1157 = vadd.f32 0.0, %v1156
    %v1158 = vpop.f32.mrb[0].mxu0
    %v1159 = vpop.f32.mrb[0].mxu0
    %v1160 = vadd.f32 0.0, %v1159
    %v1161 = vpop.f32.mrb[0].mxu0
    %1162 = vmatprep.mubr.bf16.mxu0 0
    %1163 = vmatmul.mubr.bf16.gmra.mrb[0].mxu0 %v1088
    %v1164 = vpop.f32.mrb[0].mxu0
    %v1165 = vadd.f32 0.0, %v1164
    %v1166 = vpop.f32.mrb[0].mxu0
    %v1167 = vpop.f32.mrb[0].mxu0
    %v1168 = vadd.f32 0.0, %v1167
    %v1169 = vpop.f32.mrb[0].mxu0
    %1170 = vmatprep.mubr.bf16.mxu0 0
    %1171 = vmatmul.mubr.bf16.gmra.mrb[0].mxu0 %v1091
    %v1172 = vpop.f32.mrb[0].mxu0
    %v1173 = vadd.f32 0.0, %v1172
    %v1174 = vpop.f32.mrb[0].mxu0
    %v1175 = vpop.f32.mrb[0].mxu0
    %v1176 = vadd.f32 0.0, %v1175
    %v1177 = vpop.f32.mrb[0].mxu0
    %1178 = vmatprep.mubr.bf16.mxu0 0
    %1179 = vmatmul.mubr.bf16.gmra.mrb[0].mxu0 %v1094
    %v1180 = vpop.f32.mrb[0].mxu0
    %v1181 = vadd.f32 0.0, %v1180
    %v1182 = vpop.f32.mrb[0].mxu0
    %v1183 = vpop.f32.mrb[0].mxu0
    %v1184 = vadd.f32 0.0, %v1183
    %v1185 = vpop.f32.mrb[0].mxu0
    %1186 = vmatprep.mubr.bf16.mxu0 0
    %1187 = vmatmul.mubr.bf16.gmra.mrb[0].mxu0 %v1097
    %v1188 = vpop.f32.mrb[0].mxu0
    %v1189 = vadd.f32 0.0, %v1188
    %v1190 = vpop.f32.mrb[0].mxu0
    %v1191 = vpop.f32.mrb[0].mxu0
    %v1192 = vadd.f32 0.0, %v1191
    %v1193 = vpop.f32.mrb[0].mxu0
    %1194 = vmatprep.mubr.bf16.mxu0 0
    %1195 = vmatmul.mubr.bf16.gmra.mrb[0].mxu0 %v1100
    %v1196 = vpop.f32.mrb[0].mxu0
    %v1197 = vadd.f32 0.0, %v1196
    %v1198 = vpop.f32.mrb[0].mxu0
    %v1199 = vpop.f32.mrb[0].mxu0
    %v1200 = vadd.f32 0.0, %v1199
    %v1201 = vpop.f32.mrb[0].mxu0
    %1202 = vdwg.mxu0
    %v1203 = vld [vmem:[%s6] sm:$0x1]
    %v1205 = vlaneseq
    %v1206 = vshrl.u32 %v1205, 7
    %v1207 = vsub.s32 0, %v1206
    %v1208 = vrot.slane %v1203, %v1207
    %v1210 = vmul.f32 %v1141, %v1208
    %v1211 = vmul.f32 %v1144, %v1208
    %v1212 = vmul.f32 %v1149, %v1208
    %v1213 = vmul.f32 %v1152, %v1208
    %v1214 = vmul.f32 %v1157, %v1208
    %v1215 = vmul.f32 %v1160, %v1208
    %v1216 = vmul.f32 %v1165, %v1208
    %v1217 = vmul.f32 %v1168, %v1208
    %v1218 = vmul.f32 %v1173, %v1208
    %v1219 = vmul.f32 %v1176, %v1208
    %v1220 = vmul.f32 %v1181, %v1208
    %v1221 = vmul.f32 %v1184, %v1208
    %v1222 = vmul.f32 %v1189, %v1208
    %v1223 = vmul.f32 %v1192, %v1208
    %v1224 = vmul.f32 %v1197, %v1208
    %v1225 = vmul.f32 %v1200, %v1208
    %v1226 = vld [vmem:[%s7] sm:$0x1]
    %v1228 = vlaneseq
    %v1229 = vshrl.u32 %v1228, 7
    %v1230 = vsub.s32 0, %v1229
    %v1231 = vrot.slane %v1226, %v1230
    %v1233 = vadd.f32 %v1210, %v1231
    %v1234 = vadd.f32 %v1211, %v1231
    %v1235 = vadd.f32 %v1212, %v1231
    %v1236 = vadd.f32 %v1213, %v1231
    %v1237 = vadd.f32 %v1214, %v1231
    %v1238 = vadd.f32 %v1215, %v1231
    %v1239 = vadd.f32 %v1216, %v1231
    %v1240 = vadd.f32 %v1217, %v1231
    %v1241 = vadd.f32 %v1218, %v1231
    %v1242 = vadd.f32 %v1219, %v1231
    %v1243 = vadd.f32 %v1220, %v1231
    %v1244 = vadd.f32 %v1221, %v1231
    %v1245 = vadd.f32 %v1222, %v1231
    %v1246 = vadd.f32 %v1223, %v1231
    %v1247 = vadd.f32 %v1224, %v1231
    %v1248 = vadd.f32 %v1225, %v1231
    %v1249 = vmax.f32 %v1233, 0.0
    %v1250 = vmax.f32 %v1234, 0.0
    %v1251 = vmax.f32 %v1235, 0.0
    %v1252 = vmax.f32 %v1236, 0.0
    %v1253 = vmax.f32 %v1237, 0.0
    %v1254 = vmax.f32 %v1238, 0.0
    %v1255 = vmax.f32 %v1239, 0.0
    %v1256 = vmax.f32 %v1240, 0.0
    %v1257 = vmax.f32 %v1241, 0.0
    %v1258 = vmax.f32 %v1242, 0.0
    %v1259 = vmax.f32 %v1243, 0.0
    %v1260 = vmax.f32 %v1244, 0.0
    %v1261 = vmax.f32 %v1245, 0.0
    %v1262 = vmax.f32 %v1246, 0.0
    %v1263 = vmax.f32 %v1247, 0.0
    %v1264 = vmax.f32 %v1248, 0.0
    %v1265 = vpack.c.bf16 %v1250, %v1249
    %v1266 = vpack.c.bf16 %v1252, %v1251
    %v1267 = vpack.c.bf16 %v1254, %v1253
    %v1268 = vpack.c.bf16 %v1256, %v1255
    %v1269 = vpack.c.bf16 %v1258, %v1257
    %v1270 = vpack.c.bf16 %v1260, %v1259
    %v1271 = vpack.c.bf16 %v1262, %v1261
    %v1272 = vpack.c.bf16 %v1264, %v1263
    %v1273 = vld [vmem:[%s3] sm:$0xf]
    %v1275 = vsel %vm900, %v1265, 0
    %v1278 = vsel %vm900, %v1266, 0
    %v1281 = vsel %vm900, %v1267, 0
    %v1284 = vsel %vm900, %v1268, 0
    %v1287 = vsel %vm900, %v1269, 0
    %v1290 = vsel %vm900, %v1270, 0
    %v1293 = vsel %vm900, %v1271, 0
    %v1296 = vsel %vm900, %v1272, 0
    %v1299 = vsel %vm1102, %v1273, 0
    %1301 = vmatprep.subr.bf16.mxu0 0
    %1302 = vmatpush1.bf16.msra.mxu0 %v1299
    %1303 = vmatprep.subr.bf16.mxu0 0
    %1304 = vmatpush1.bf16.msra.mxu0 0
    %1305 = vmatprep.subr.bf16.mxu0 0
    %1306 = vmatpush1.bf16.msra.mxu0 0
    %1307 = vmatprep.subr.bf16.mxu0 0
    %1308 = vmatpush1.bf16.msra.mxu0 0
    %1309 = vmatprep.subr.bf16.mxu0 0
    %1310 = vmatpush1.bf16.msra.mxu0 0
    %1311 = vmatprep.subr.bf16.mxu0 0
    %1312 = vmatpush1.bf16.msra.mxu0 0
    %1313 = vmatprep.subr.bf16.mxu0 0
    %1314 = vmatpush1.bf16.msra.mxu0 0
    %1315 = vmatprep.subr.bf16.mxu0 0
    %1316 = vmatpush1.bf16.msra.mxu0 0
    %1317 = vmatprep.subr.bf16.mxu0 0
    %1318 = vmatpush1.bf16.msra.mxu0 0
    %1319 = vmatprep.subr.bf16.mxu0 0
    %1320 = vmatpush1.bf16.msra.mxu0 0
    %1321 = vmatprep.subr.bf16.mxu0 0
    %1322 = vmatpush1.bf16.msra.mxu0 0
    %1323 = vmatprep.subr.bf16.mxu0 0
    %1324 = vmatpush1.bf16.msra.mxu0 0
    %1325 = vmatprep.subr.bf16.mxu0 0
    %1326 = vmatpush1.bf16.msra.mxu0 0
    %1327 = vmatprep.subr.bf16.mxu0 0
    %1328 = vmatpush1.bf16.msra.mxu0 0
    %1329 = vmatprep.subr.bf16.mxu0 0
    %1330 = vmatpush1.bf16.msra.mxu0 0
    %1331 = vmatprep.subr.bf16.mxu0 0
    %1332 = vmatpush1.bf16.msra.mxu0 0
    %1333 = vmatprep.mubr.bf16.mxu0 0
    %1334 = vmatmul.mubr.bf16.gmra.mrb[0].mxu0 %v1275
    %v1335 = vpop.f32.mrb[0].mxu0
    %v1336 = vadd.f32 0.0, %v1335
    %v1337 = vpop.f32.mrb[0].mxu0
    %v1338 = vpop.f32.mrb[0].mxu0
    %v1339 = vadd.f32 0.0, %v1338
    %v1340 = vpop.f32.mrb[0].mxu0
    %1341 = vmatprep.mubr.bf16.mxu0 0
    %1342 = vmatmul.mubr.bf16.gmra.mrb[0].mxu0 %v1278
    %v1343 = vpop.f32.mrb[0].mxu0
    %v1344 = vadd.f32 0.0, %v1343
    %v1345 = vpop.f32.mrb[0].mxu0
    %v1346 = vpop.f32.mrb[0].mxu0
    %v1347 = vadd.f32 0.0, %v1346
    %v1348 = vpop.f32.mrb[0].mxu0
    %1349 = vmatprep.mubr.bf16.mxu0 0
    %1350 = vmatmul.mubr.bf16.gmra.mrb[0].mxu0 %v1281
    %v1351 = vpop.f32.mrb[0].mxu0
    %v1352 = vadd.f32 0.0, %v1351
    %v1353 = vpop.f32.mrb[0].mxu0
    %v1354 = vpop.f32.mrb[0].mxu0
    %v1355 = vadd.f32 0.0, %v1354
    %v1356 = vpop.f32.mrb[0].mxu0
    %1357 = vmatprep.mubr.bf16.mxu0 0
    %1358 = vmatmul.mubr.bf16.gmra.mrb[0].mxu0 %v1284
    %v1359 = vpop.f32.mrb[0].mxu0
    %v1360 = vadd.f32 0.0, %v1359
    %v1361 = vpop.f32.mrb[0].mxu0
    %v1362 = vpop.f32.mrb[0].mxu0
    %v1363 = vadd.f32 0.0, %v1362
    %v1364 = vpop.f32.mrb[0].mxu0
    %1365 = vmatprep.mubr.bf16.mxu0 0
    %1366 = vmatmul.mubr.bf16.gmra.mrb[0].mxu0 %v1287
    %v1367 = vpop.f32.mrb[0].mxu0
    %v1368 = vadd.f32 0.0, %v1367
    %v1369 = vpop.f32.mrb[0].mxu0
    %v1370 = vpop.f32.mrb[0].mxu0
    %v1371 = vadd.f32 0.0, %v1370
    %v1372 = vpop.f32.mrb[0].mxu0
    %1373 = vmatprep.mubr.bf16.mxu0 0
    %1374 = vmatmul.mubr.bf16.gmra.mrb[0].mxu0 %v1290
    %v1375 = vpop.f32.mrb[0].mxu0
    %v1376 = vadd.f32 0.0, %v1375
    %v1377 = vpop.f32.mrb[0].mxu0
    %v1378 = vpop.f32.mrb[0].mxu0
    %v1379 = vadd.f32 0.0, %v1378
    %v1380 = vpop.f32.mrb[0].mxu0
    %1381 = vmatprep.mubr.bf16.mxu0 0
    %1382 = vmatmul.mubr.bf16.gmra.mrb[0].mxu0 %v1293
    %v1383 = vpop.f32.mrb[0].mxu0
    %v1384 = vadd.f32 0.0, %v1383
    %v1385 = vpop.f32.mrb[0].mxu0
    %v1386 = vpop.f32.mrb[0].mxu0
    %v1387 = vadd.f32 0.0, %v1386
    %v1388 = vpop.f32.mrb[0].mxu0
    %1389 = vmatprep.mubr.bf16.mxu0 0
    %1390 = vmatmul.mubr.bf16.gmra.mrb[0].mxu0 %v1296
    %v1391 = vpop.f32.mrb[0].mxu0
    %v1392 = vadd.f32 0.0, %v1391
    %v1393 = vpop.f32.mrb[0].mxu0
    %v1394 = vpop.f32.mrb[0].mxu0
    %v1395 = vadd.f32 0.0, %v1394
    %v1396 = vpop.f32.mrb[0].mxu0
    %1397 = vdwg.mxu0
    %v1398 = vld [vmem:[%s8] sm:$0x1]
    %v1400 = vlaneseq
    %v1401 = vshrl.u32 %v1400, 7
    %v1402 = vsub.s32 0, %v1401
    %v1403 = vrot.slane %v1398, %v1402
    %v1405 = vmul.f32 %v1336, %v1403
    %v1406 = vmul.f32 %v1339, %v1403
    %v1407 = vmul.f32 %v1344, %v1403
    %v1408 = vmul.f32 %v1347, %v1403
    %v1409 = vmul.f32 %v1352, %v1403
    %v1410 = vmul.f32 %v1355, %v1403
    %v1411 = vmul.f32 %v1360, %v1403
    %v1412 = vmul.f32 %v1363, %v1403
    %v1413 = vmul.f32 %v1368, %v1403
    %v1414 = vmul.f32 %v1371, %v1403
    %v1415 = vmul.f32 %v1376, %v1403
    %v1416 = vmul.f32 %v1379, %v1403
    %v1417 = vmul.f32 %v1384, %v1403
    %v1418 = vmul.f32 %v1387, %v1403
    %v1419 = vmul.f32 %v1392, %v1403
    %v1420 = vmul.f32 %v1395, %v1403
    %v1421 = vld [vmem:[%s9] sm:$0x1]
    %v1423 = vlaneseq
    %v1424 = vshrl.u32 %v1423, 7
    %v1425 = vsub.s32 0, %v1424
    %v1426 = vrot.slane %v1421, %v1425
    %v1428 = vadd.f32 %v1405, %v1426
    %v1429 = vadd.f32 %v1406, %v1426
    %v1430 = vadd.f32 %v1407, %v1426
    %v1431 = vadd.f32 %v1408, %v1426
    %v1432 = vadd.f32 %v1409, %v1426
    %v1433 = vadd.f32 %v1410, %v1426
    %v1434 = vadd.f32 %v1411, %v1426
    %v1435 = vadd.f32 %v1412, %v1426
    %v1436 = vadd.f32 %v1413, %v1426
    %v1437 = vadd.f32 %v1414, %v1426
    %v1438 = vadd.f32 %v1415, %v1426
    %v1439 = vadd.f32 %v1416, %v1426
    %v1440 = vadd.f32 %v1417, %v1426
    %v1441 = vadd.f32 %v1418, %v1426
    %v1442 = vadd.f32 %v1419, %v1426
    %v1443 = vadd.f32 %v1420, %v1426
    %v1444 = vunpack.c.l.bf16 %v51
    %v1445 = vunpack.c.l.bf16 %v52
    %v1446 = vunpack.c.l.bf16 %v53
    %v1447 = vunpack.c.l.bf16 %v54
    %v1448 = vunpack.c.l.bf16 %v55
    %v1449 = vunpack.c.l.bf16 %v56
    %v1450 = vunpack.c.l.bf16 %v57
    %v1451 = vunpack.c.l.bf16 %v58
    %v1452 = vunpack.c.l.bf16 %v59
    %v1453 = vunpack.c.l.bf16 %v60
    %v1454 = vunpack.c.l.bf16 %v61
    %v1455 = vunpack.c.l.bf16 %v62
    %v1456 = vunpack.c.l.bf16 %v63
    %v1457 = vunpack.c.l.bf16 %v64
    %v1458 = vunpack.c.l.bf16 %v65
    %v1459 = vunpack.c.l.bf16 %v66
    %v1460 = vadd.f32 %v1428, %v1444
    %v1461 = vadd.f32 %v1429, %v1445
    %v1462 = vadd.f32 %v1430, %v1446
    %v1463 = vadd.f32 %v1431, %v1447
    %v1464 = vadd.f32 %v1432, %v1448
    %v1465 = vadd.f32 %v1433, %v1449
    %v1466 = vadd.f32 %v1434, %v1450
    %v1467 = vadd.f32 %v1435, %v1451
    %v1468 = vadd.f32 %v1436, %v1452
    %v1469 = vadd.f32 %v1437, %v1453
    %v1470 = vadd.f32 %v1438, %v1454
    %v1471 = vadd.f32 %v1439, %v1455
    %v1472 = vadd.f32 %v1440, %v1456
    %v1473 = vadd.f32 %v1441, %v1457
    %v1474 = vadd.f32 %v1442, %v1458
    %v1475 = vadd.f32 %v1443, %v1459
    %v1476 = vmax.f32 %v1460, 0.0
    %v1477 = vmax.f32 %v1461, 0.0
    %v1478 = vmax.f32 %v1462, 0.0
    %v1479 = vmax.f32 %v1463, 0.0
    %v1480 = vmax.f32 %v1464, 0.0
    %v1481 = vmax.f32 %v1465, 0.0
    %v1482 = vmax.f32 %v1466, 0.0
    %v1483 = vmax.f32 %v1467, 0.0
    %v1484 = vmax.f32 %v1468, 0.0
    %v1485 = vmax.f32 %v1469, 0.0
    %v1486 = vmax.f32 %v1470, 0.0
    %v1487 = vmax.f32 %v1471, 0.0
    %v1488 = vmax.f32 %v1472, 0.0
    %v1489 = vmax.f32 %v1473, 0.0
    %v1490 = vmax.f32 %v1474, 0.0
    %v1491 = vmax.f32 %v1475, 0.0
    %1492 = vst.msk [vmem:[#allocation5] sm:$0xff] %vm123, %v1476
    %1493 = vst.msk [vmem:[#allocation5 + $0x8] sm:$0xff] %vm123, %v1477
    %1494 = vst.msk [vmem:[#allocation5 + $0x10] sm:$0xff] %vm123, %v1478
    %1495 = vst.msk [vmem:[#allocation5 + $0x18] sm:$0xff] %vm123, %v1479
    %1496 = vst.msk [vmem:[#allocation5 + $0x20] sm:$0xff] %vm123, %v1480
    %1497 = vst.msk [vmem:[#allocation5 + $0x28] sm:$0xff] %vm123, %v1481
    %1498 = vst.msk [vmem:[#allocation5 + $0x30] sm:$0xff] %vm123, %v1482
    %1499 = vst.msk [vmem:[#allocation5 + $0x38] sm:$0xff] %vm123, %v1483
    %1500 = vst.msk [vmem:[#allocation5 + $0x40] sm:$0xff] %vm123, %v1484
    %1501 = vst.msk [vmem:[#allocation5 + $0x48] sm:$0xff] %vm123, %v1485
    %1502 = vst.msk [vmem:[#allocation5 + $0x50] sm:$0xff] %vm123, %v1486
    %1503 = vst.msk [vmem:[#allocation5 + $0x58] sm:$0xff] %vm123, %v1487
    %1504 = vst.msk [vmem:[#allocation5 + $0x60] sm:$0xff] %vm123, %v1488
    %1505 = vst.msk [vmem:[#allocation5 + $0x68] sm:$0xff] %vm123, %v1489
    %1506 = vst.msk [vmem:[#allocation5 + $0x70] sm:$0xff] %vm123, %v1490
    %1507 = vst.msk [vmem:[#allocation5 + $0x78] sm:$0xff] %vm123, %v1491
    // Predicated region
    $region46: #{tpu_custom_call.1} parent=1 // pred_check
      _
    $region47: #{tpu_custom_call.1} parent=1 // pred_check_branch
      %1509 = sbr.rel (0) target = $region49
    $region48: #{tpu_custom_call.1} parent=1 // pred_region
      %s1511 = ssub.s32 2048, 2048
      %1512 = vsyncadd [#allocation4], %s1511
      %s1513 = sshll.u32 [#allocation5], 4
      %s1514 = int_to_ptr.vmem [resolvable:$true] %s1513
      %1519 = dma.vmem_to_hbm [thread:$0]  %s1514, 2048, %s10, [#allocation4], 128, 128, 8
    $region49: #{tpu_custom_call.1} parent=1 // pred_fallthru
      _
    // Predicated region
    $region50: #{tpu_custom_call.1} parent=1 // pred_check
      _
    $region51: #{tpu_custom_call.1} parent=1 // pred_check_branch
      %1521 = sbr.rel (0) target = $region53
    $region52: #{tpu_custom_call.1} parent=1 // pred_region
      %1522 = dma.done [#allocation4], 2048
    $region53: #{tpu_custom_call.1} parent=1 // pred_fallthru
      _
    %1523 = vsyncpa [#allocation3], 1
    %1524 = vsyncpa [#allocation4], 1

</llo_original>
